<compile_context>
chip_gen: v6e
topology: v6e:2x2x1
jax: 0.10.0
libtpu: 0.0.40
codegen_flags: <defaults>
</compile_context>

<pallas_src>
import functools
import math

import jax
import jax.numpy as jnp
from jax.experimental import pallas as pl
from jax.experimental.pallas import tpu as pltpu


VMEM_LIMIT_BYTES = 48 * 1024 * 1024   # explicit scoped-VMEM budget


def _pick_tile(dim, target, align):
    """Largest tile <= target that divides dim and is `align`-aligned, else full dim."""
    if dim <= target:
        return dim
    t = (target // align) * align
    while t >= align:
        if dim % t == 0:
            return t
        t -= align
    return dim


# ---------------------------- Pallas kernels ----------------------------

def _layernorm_kernel(x_ref, g_ref, b_ref, o_ref, *, eps):
    x = x_ref[...].astype(jnp.float32)
    mu = jnp.mean(x, axis=-1, keepdims=True)
    var = jnp.mean((x - mu) ** 2, axis=-1, keepdims=True)
    o_ref[...] = ((x - mu) * jax.lax.rsqrt(var + eps)
                  * g_ref[...] + b_ref[...]).astype(o_ref.dtype)


def layernorm(x, g, b, *, eps=1e-12, out_dtype=jnp.bfloat16, tm=256):
    m, d = x.shape
    tm = _pick_tile(m, tm, 8)
    return pl.pallas_call(
        functools.partial(_layernorm_kernel, eps=eps),
        out_shape=jax.ShapeDtypeStruct((m, d), out_dtype),
        grid=(m // tm,),
        in_specs=[pl.BlockSpec((tm, d), lambda i: (i, 0)),
                  pl.BlockSpec((1, d), lambda i: (0, 0)),
                  pl.BlockSpec((1, d), lambda i: (0, 0))],
        out_specs=pl.BlockSpec((tm, d), lambda i: (i, 0)),
        compiler_params=pltpu.CompilerParams(
            dimension_semantics=("parallel",),
            vmem_limit_bytes=VMEM_LIMIT_BYTES),
    )(x, g.reshape(1, d), b.reshape(1, d))


def _attn_block_kernel(x_ref, m_ref, wqkv_ref, bqkv_ref, wo_ref, bo_ref,
                       g_ref, beta_ref, o_ref, *, n_heads, head_dim, scale, eps):
    # one batch element per grid step; heads unrolled statically in-register.
    x = x_ref[0]                                           # (S, D) bf16
    mask = m_ref[0]                                        # (1, S) f32
    d = n_heads * head_dim

    # fused QKV projection (MXU, f32 accumulation), kept entirely in VMEM.
    qkv = jnp.dot(x, wqkv_ref[...],
                  preferred_element_type=jnp.float32) + bqkv_ref[...]
    qkv = qkv.astype(jnp.bfloat16)                         # (S, 3D)

    neg_inf = jnp.finfo(jnp.float32).min
    outs = []
    for h in range(n_heads):
        q = qkv[:, h * head_dim:(h + 1) * head_dim]                     # (S, Dh)
        k = qkv[:, d + h * head_dim: d + (h + 1) * head_dim]            # (S, Dh)
        v = qkv[:, 2 * d + h * head_dim: 2 * d + (h + 1) * head_dim]    # (S, Dh)
        s = jax.lax.dot_general(q, k, (((1,), (1,)), ((), ())),
                                preferred_element_type=jnp.float32)     # (S, S)
        s = s * scale
        s = jnp.where(mask > 0.5, s, neg_inf)
        s = s - jnp.max(s, axis=-1, keepdims=True)
        p = jnp.exp(s)
        p = p * pl.reciprocal(jnp.sum(p, axis=-1, keepdims=True), approx=True)
        outs.append(jnp.dot(p.astype(v.dtype), v,
                            preferred_element_type=jnp.float32))        # (S, Dh)
    ctx = jnp.concatenate(outs, axis=-1).astype(jnp.bfloat16)           # (S, D)

    # output projection + residual + LayerNorm, all fused here.
    y = jnp.dot(ctx, wo_ref[...],
                preferred_element_type=jnp.float32) + bo_ref[...]
    y = y + x.astype(jnp.float32)
    mu = jnp.mean(y, axis=-1, keepdims=True)
    var = jnp.mean((y - mu) ** 2, axis=-1, keepdims=True)
    o_ref[0] = ((y - mu) * jax.lax.rsqrt(var + eps)
                * g_ref[...] + beta_ref[...]).astype(o_ref.dtype)


def attention_block(x, mask3, wqkv, bqkv, wo, bo, g, beta, *,
                    n_heads, head_dim, eps=1e-12, out_dtype=jnp.bfloat16):
    """LN(x + Wo @ MHA(x @ Wqkv) ): one pallas_call per layer for the attention block."""
    b, s, d = x.shape
    scale = 1.0 / math.sqrt(head_dim)
    cost = pl.CostEstimate(
        flops=b * (2 * s * d * 3 * d + 4 * n_heads * s * s * head_dim + 2 * s * d * d),
        transcendentals=b * (n_heads * s * s + s),
        bytes_accessed=(x.size * x.dtype.itemsize
                        + wqkv.size * wqkv.dtype.itemsize
                        + wo.size * wo.dtype.itemsize
                        + b * s * d * jnp.dtype(out_dtype).itemsize))
    return pl.pallas_call(
        functools.partial(_attn_block_kernel, n_heads=n_heads,
                          head_dim=head_dim, scale=scale, eps=eps),
        out_shape=jax.ShapeDtypeStruct((b, s, d), out_dtype),
        grid=(b,),
        in_specs=[pl.BlockSpec((1, s, d), lambda i: (i, 0, 0)),
                  pl.BlockSpec((1, 1, s), lambda i: (i, 0, 0)),
                  pl.BlockSpec((d, 3 * d), lambda i: (0, 0)),
                  pl.BlockSpec((1, 3 * d), lambda i: (0, 0)),
                  pl.BlockSpec((d, d), lambda i: (0, 0)),
                  pl.BlockSpec((1, d), lambda i: (0, 0)),
                  pl.BlockSpec((1, d), lambda i: (0, 0)),
                  pl.BlockSpec((1, d), lambda i: (0, 0))],
        out_specs=pl.BlockSpec((1, s, d), lambda i: (i, 0, 0)),
        compiler_params=pltpu.CompilerParams(
            dimension_semantics=("parallel",),
            vmem_limit_bytes=VMEM_LIMIT_BYTES),
        cost_estimate=cost,
    )(x, mask3, wqkv, bqkv.reshape(1, 3 * d), wo, bo.reshape(1, d),
      g.reshape(1, d), beta.reshape(1, d))


def _ffn_block_kernel(x_ref, w1_ref, b1_ref, w2_ref, b2_ref,
                      g_ref, beta_ref, o_ref, *, eps):
    x = x_ref[...]                                                       # (tm, D) bf16
    h = jnp.dot(x, w1_ref[...],
                preferred_element_type=jnp.float32) + b1_ref[...]        # (tm, FF)
    # TODO(synk): HF DistilBERT uses exact erf-GELU; tanh approximation used here.
    h = jax.nn.gelu(h, approximate=True).astype(jnp.bfloat16)
    y = jnp.dot(h, w2_ref[...],
                preferred_element_type=jnp.float32) + b2_ref[...]        # (tm, D)
    y = y + x.astype(jnp.float32)                                        # residual
    mu = jnp.mean(y, axis=-1, keepdims=True)
    var = jnp.mean((y - mu) ** 2, axis=-1, keepdims=True)
    o_ref[...] = ((y - mu) * jax.lax.rsqrt(var + eps)
                  * g_ref[...] + beta_ref[...]).astype(o_ref.dtype)


def ffn_block(x, w1, b1, w2, b2, g, beta, *, eps=1e-12,
              out_dtype=jnp.bfloat16, tm=256):
    """LN(x + W2 @ GELU(W1 @ x)): one pallas_call per layer for the FFN block."""
    m, d = x.shape
    ff = w1.shape[1]
    tm = _pick_tile(m, tm, 8)
    grid = (m // tm,)
    cost = pl.CostEstimate(
        flops=2 * m * d * ff * 2 + 10 * m * ff,
        transcendentals=m * ff + m,
        bytes_accessed=(m * d * x.dtype.itemsize
                        + (d * ff + ff * d) * w1.dtype.itemsize
                        + m * d * jnp.dtype(out_dtype).itemsize))
    return pl.pallas_call(
        functools.partial(_ffn_block_kernel, eps=eps),
        out_shape=jax.ShapeDtypeStruct((m, d), out_dtype),
        grid=grid,
        in_specs=[pl.BlockSpec((tm, d), lambda i: (i, 0)),
                  pl.BlockSpec((d, ff), lambda i: (0, 0)),
                  pl.BlockSpec((1, ff), lambda i: (0, 0)),
                  pl.BlockSpec((ff, d), lambda i: (0, 0)),
                  pl.BlockSpec((1, d), lambda i: (0, 0)),
                  pl.BlockSpec((1, d), lambda i: (0, 0)),
                  pl.BlockSpec((1, d), lambda i: (0, 0))],
        out_specs=pl.BlockSpec((tm, d), lambda i: (i, 0)),
        compiler_params=pltpu.CompilerParams(
            dimension_semantics=("parallel",),
            vmem_limit_bytes=VMEM_LIMIT_BYTES),
        cost_estimate=cost,
    )(x, w1, b1.reshape(1, ff), w2, b2.reshape(1, d),
      g.reshape(1, d), beta.reshape(1, d))


def _pool_fc_kernel(h_ref, w_ref, b_ref, o_ref):
    pooled = jnp.mean(h_ref[...].astype(jnp.float32), axis=1)   # mean over seq -> (B, D)
    o_ref[...] = jnp.dot(pooled.astype(w_ref.dtype), w_ref[...],
                         preferred_element_type=jnp.float32) + b_ref[...]


def pool_fc(h, w_pad, b_pad):
    bsz, _, _ = h.shape
    n = w_pad.shape[1]
    return pl.pallas_call(
        _pool_fc_kernel,
        out_shape=jax.ShapeDtypeStruct((bsz, n), jnp.float32),
        compiler_params=pltpu.CompilerParams(vmem_limit_bytes=VMEM_LIMIT_BYTES),
    )(h, w_pad, b_pad.reshape(1, n))


# ---------------------------- model glue (plain JAX) ----------------------------

def init_params(key, *, vocab, max_pos, dim, n_heads, ff, n_layers, n_classes):
    del n_heads

    def dense(k, fan_in, fan_out):
        return jax.random.normal(k, (fan_in, fan_out), jnp.float32) * 0.02

    n_pad = max(128, ((n_classes + 127) // 128) * 128)
    keys = jax.random.split(key, 4 + n_layers)
    fc_w = dense(keys[2], dim, n_classes)
    fc_w_pad = jnp.zeros((dim, n_pad), jnp.float32).at[:, :n_classes].set(fc_w)
    params = {
        "word_emb": jax.random.normal(keys[0], (vocab, dim), jnp.float32) * 0.02,
        "pos_emb": jax.random.normal(keys[1], (max_pos, dim), jnp.float32) * 0.02,
        "emb_ln_g": jnp.ones((dim,), jnp.float32),
        "emb_ln_b": jnp.zeros((dim,), jnp.float32),
        "fc_w_pad": fc_w_pad.astype(jnp.bfloat16),       # classifier head, padded to 128 lanes
        "fc_b_pad": jnp.zeros((n_pad,), jnp.float32),
        "layers": [],
    }
    for li in range(n_layers):
        lk = jax.random.split(keys[4 + li], 6)
        zeros_d = jnp.zeros((dim,), jnp.float32)
        qkv_w = jnp.concatenate([dense(lk[0], dim, dim),
                                 dense(lk[1], dim, dim),
                                 dense(lk[2], dim, dim)], axis=1)        # (D, 3D)
        params["layers"].append({
            "qkv_w": qkv_w.astype(jnp.bfloat16),
            "qkv_b": jnp.zeros((3 * dim,), jnp.float32),
            "o_w": dense(lk[3], dim, dim).astype(jnp.bfloat16), "o_b": zeros_d,
            "ln1_g": jnp.ones((dim,), jnp.float32), "ln1_b": zeros_d,
            "lin1_w": dense(lk[4], dim, ff).astype(jnp.bfloat16),
            "lin1_b": jnp.zeros((ff,), jnp.float32),
            "lin2_w": dense(lk[5], ff, dim).astype(jnp.bfloat16), "lin2_b": zeros_d,
            "ln2_g": jnp.ones((dim,), jnp.float32), "ln2_b": zeros_d,
        })
    return params


@functools.partial(jax.jit, static_argnames=("n_heads", "n_classes"))
def intent_classifier_forward(params, input_ids, attention_mask, *, n_heads, n_classes):
    B, S = input_ids.shape
    D = params["word_emb"].shape[1]
    Dh = D // n_heads

    # --- DistilBERT embeddings: word + position gather (XLA), then LayerNorm kernel ---
    pos_ids = jnp.arange(S)
    h = params["word_emb"][input_ids] + params["pos_emb"][pos_ids][None, :, :]
    h2 = layernorm(h.reshape(B * S, D), params["emb_ln_g"], params["emb_ln_b"])  # (M, D) bf16

    # attention mask -> (B, 1, S) float (1 = keep, 0 = masked_fill with finfo.min)
    mask3 = attention_mask.astype(jnp.float32).reshape(B, 1, S)

    # --- DistilBERT transformer layers: 2 fused pallas_calls per layer ---
    h3 = h2.reshape(B, S, D)
    for layer in params["layers"]:
        # sa_layer_norm(x + out_lin(MHA(qkv(x))))   -- fully fused per batch element
        h3 = attention_block(h3, mask3,
                             layer["qkv_w"], layer["qkv_b"],
                             layer["o_w"], layer["o_b"],
                             layer["ln1_g"], layer["ln1_b"],
                             n_heads=n_heads, head_dim=Dh)
        # output_layer_norm(x + lin2(gelu(lin1(x))))  -- fully fused per token tile
        h3 = ffn_block(h3.reshape(B * S, D),
                       layer["lin1_w"], layer["lin1_b"],
                       layer["lin2_w"], layer["lin2_b"],
                       layer["ln2_g"], layer["ln2_b"]).reshape(B, S, D)

    # pooled = last_hidden_state.mean(dim=1); logits = fc(pooled)  (fused, 128-lane padded)
    logits_pad = pool_fc(h3, params["fc_w_pad"], params["fc_b_pad"])
    return logits_pad[:, :n_classes]


# ---------------------------- demo ----------------------------

if __name__ == "__main__":
    cfg = dict(vocab=100, max_pos=32, dim=32, n_heads=2, ff=64, n_layers=2, n_classes=5)
    B, S = 2, 8

    key = jax.random.PRNGKey(0)
    pkey, ikey = jax.random.split(key)
    params = init_params(pkey, **cfg)

    input_ids = jax.random.randint(ikey, (B, S), 0, cfg["vocab"], dtype=jnp.int32)
    attention_mask = jnp.array([[1, 1, 1, 1, 1, 1, 1, 1],
                                [1, 1, 1, 1, 1, 1, 0, 0]], dtype=jnp.int32)

    logits = intent_classifier_forward(params, input_ids, attention_mask,
                                       n_heads=cfg["n_heads"],
                                       n_classes=cfg["n_classes"])
    jax.block_until_ready(logits)
    assert logits.shape == (B, cfg["n_classes"])
    assert bool(jnp.all(jnp.isfinite(logits)))
    print("KERNEL_OK")
</pallas_src>

<mosaic_0001>
module attributes {stable_mosaic.version = 11 : i64} {
  func.func @_layernorm_kernel(%arg0: i32, %arg1: memref<16x32xf32, #tpu.memory_space<vmem>>, %arg2: memref<1x32xf32, #tpu.memory_space<vmem>>, %arg3: memref<1x32xf32, #tpu.memory_space<vmem>>, %arg4: memref<16x32xbf16, #tpu.memory_space<vmem>>) attributes {dimension_semantics = [#tpu.dimension_semantics<parallel>], iteration_bounds = array<i64: 1>, scalar_prefetch = 0 : i64, scratch_operands = 0 : i64, tpu.core_type = #tpu.core_type<tc>, window_params = [{transform_indices = @transform_0, window_bounds = array<i64: 16, 32>}, {pipeline_mode = #tpu.pipeline_mode<synchronous>, transform_indices = @transform_1, window_bounds = array<i64: 1, 32>}, {pipeline_mode = #tpu.pipeline_mode<synchronous>, transform_indices = @transform_2, window_bounds = array<i64: 1, 32>}, {transform_indices = @transform_3, window_bounds = array<i64: 16, 32>}]} {
    %c0 = arith.constant 0 : index
    %c0_0 = arith.constant 0 : index
    %0 = vector.load %arg1[%c0, %c0_0] : memref<16x32xf32, #tpu.memory_space<vmem>>, vector<16x32xf32>
    %cst = arith.constant dense<0.000000e+00> : vector<16xf32>
    %1 = vector.multi_reduction <add>, %0, %cst [1] : vector<16x32xf32> to vector<16xf32>
    %2 = vector.shape_cast %1 : vector<16xf32> to vector<16x1xf32>
    %cst_1 = arith.constant 3.200000e+01 : f32
    %3 = vector.broadcast %cst_1 : f32 to vector<16x1xf32>
    %4 = arith.divf %2, %3 : vector<16x1xf32>
    %5 = vector.broadcast %4 : vector<16x1xf32> to vector<16x32xf32>
    %6 = arith.subf %0, %5 : vector<16x32xf32>
    %7 = arith.mulf %6, %6 : vector<16x32xf32>
    %cst_2 = arith.constant dense<0.000000e+00> : vector<16xf32>
    %8 = vector.multi_reduction <add>, %7, %cst_2 [1] : vector<16x32xf32> to vector<16xf32>
    %9 = vector.shape_cast %8 : vector<16xf32> to vector<16x1xf32>
    %cst_3 = arith.constant 3.200000e+01 : f32
    %10 = vector.broadcast %cst_3 : f32 to vector<16x1xf32>
    %11 = arith.divf %9, %10 : vector<16x1xf32>
    %12 = vector.broadcast %4 : vector<16x1xf32> to vector<16x32xf32>
    %13 = arith.subf %0, %12 : vector<16x32xf32>
    %cst_4 = arith.constant 9.99999996E-13 : f32
    %14 = vector.broadcast %cst_4 : f32 to vector<16x1xf32>
    %15 = arith.addf %11, %14 : vector<16x1xf32>
    %16 = math.rsqrt %15 : vector<16x1xf32>
    %17 = vector.broadcast %16 : vector<16x1xf32> to vector<16x32xf32>
    %18 = arith.mulf %13, %17 : vector<16x32xf32>
    %c0_5 = arith.constant 0 : index
    %c0_6 = arith.constant 0 : index
    %19 = vector.load %arg2[%c0_5, %c0_6] : memref<1x32xf32, #tpu.memory_space<vmem>>, vector<1x32xf32>
    %20 = vector.broadcast %19 : vector<1x32xf32> to vector<16x32xf32>
    %21 = arith.mulf %18, %20 : vector<16x32xf32>
    %c0_7 = arith.constant 0 : index
    %c0_8 = arith.constant 0 : index
    %22 = vector.load %arg3[%c0_7, %c0_8] : memref<1x32xf32, #tpu.memory_space<vmem>>, vector<1x32xf32>
    %23 = vector.broadcast %22 : vector<1x32xf32> to vector<16x32xf32>
    %24 = arith.addf %21, %23 : vector<16x32xf32>
    %25 = arith.truncf %24 : vector<16x32xf32> to vector<16x32xbf16>
    %c0_9 = arith.constant 0 : index
    %c0_10 = arith.constant 0 : index
    %26 = vector.load %arg4[%c0_9, %c0_10] : memref<16x32xbf16, #tpu.memory_space<vmem>>, vector<16x32xbf16>
    tpu.vector_store %arg4[%c0_9, %c0_10], %25 {strides = array<i32>} : memref<16x32xbf16, #tpu.memory_space<vmem>>, vector<16x32xbf16>,
    return
  }
  func.func @transform_0(%arg0: i32) -> (i32, i32) {
    %c0_i32 = arith.constant 0 : i32
    %c0_i32_0 = arith.constant 0 : i32
    return %arg0, %c0_i32 : i32, i32
  }
  func.func @transform_1(%arg0: i32) -> (i32, i32) {
    %c0_i32 = arith.constant 0 : i32
    %c0_i32_0 = arith.constant 0 : i32
    %c0_i32_1 = arith.constant 0 : i32
    return %c0_i32, %c0_i32_0 : i32, i32
  }
  func.func @transform_2(%arg0: i32) -> (i32, i32) {
    %c0_i32 = arith.constant 0 : i32
    %c0_i32_0 = arith.constant 0 : i32
    %c0_i32_1 = arith.constant 0 : i32
    return %c0_i32, %c0_i32_0 : i32, i32
  }
  func.func @transform_3(%arg0: i32) -> (i32, i32) {
    %c0_i32 = arith.constant 0 : i32
    %c0_i32_0 = arith.constant 0 : i32
    return %arg0, %c0_i32 : i32, i32
  }
}

module attributes {stable_mosaic.version = 11 : i64} {
  func.func @_ffn_block_kernel(%arg0: i32, %arg1: memref<16x32xbf16, #tpu.memory_space<vmem>>, %arg2: memref<32x64xbf16, #tpu.memory_space<vmem>>, %arg3: memref<1x64xf32, #tpu.memory_space<vmem>>, %arg4: memref<64x32xbf16, #tpu.memory_space<vmem>>, %arg5: memref<1x32xf32, #tpu.memory_space<vmem>>, %arg6: memref<1x32xf32, #tpu.memory_space<vmem>>, %arg7: memref<1x32xf32, #tpu.memory_space<vmem>>, %arg8: memref<16x32xbf16, #tpu.memory_space<vmem>>) attributes {dimension_semantics = [#tpu.dimension_semantics<parallel>], iteration_bounds = array<i64: 1>, scalar_prefetch = 0 : i64, scratch_operands = 0 : i64, tpu.core_type = #tpu.core_type<tc>, window_params = [{transform_indices = @transform_0, window_bounds = array<i64: 16, 32>}, {pipeline_mode = #tpu.pipeline_mode<synchronous>, transform_indices = @transform_1, window_bounds = array<i64: 32, 64>}, {pipeline_mode = #tpu.pipeline_mode<synchronous>, transform_indices = @transform_2, window_bounds = array<i64: 1, 64>}, {pipeline_mode = #tpu.pipeline_mode<synchronous>, transform_indices = @transform_3, window_bounds = array<i64: 64, 32>}, {pipeline_mode = #tpu.pipeline_mode<synchronous>, transform_indices = @transform_4, window_bounds = array<i64: 1, 32>}, {pipeline_mode = #tpu.pipeline_mode<synchronous>, transform_indices = @transform_5, window_bounds = array<i64: 1, 32>}, {pipeline_mode = #tpu.pipeline_mode<synchronous>, transform_indices = @transform_6, window_bounds = array<i64: 1, 32>}, {transform_indices = @transform_7, window_bounds = array<i64: 16, 32>}]} {
    %c0 = arith.constant 0 : index
    %c0_0 = arith.constant 0 : index
    %0 = vector.load %arg1[%c0, %c0_0] : memref<16x32xbf16, #tpu.memory_space<vmem>>, vector<16x32xbf16>
    %c0_1 = arith.constant 0 : index
    %c0_2 = arith.constant 0 : index
    %1 = vector.load %arg2[%c0_1, %c0_2] : memref<32x64xbf16, #tpu.memory_space<vmem>>, vector<32x64xbf16>
    %cst = arith.constant dense<0.000000e+00> : vector<16x64xf32>
    %2 = tpu.matmul %0, %1, %cst {dimension_numbers = #tpu.dot_dimension_numbers<[1], [0], [0], [1], [0, 0, 1, 1], [], []>} : vector<16x32xbf16>, vector<32x64xbf16>, vector<16x64xf32> -> vector<16x64xf32>
    %c0_3 = arith.constant 0 : index
    %c0_4 = arith.constant 0 : index
    %3 = vector.load %arg3[%c0_3, %c0_4] : memref<1x64xf32, #tpu.memory_space<vmem>>, vector<1x64xf32>
    %4 = vector.broadcast %3 : vector<1x64xf32> to vector<16x64xf32>
    %5 = arith.addf %2, %4 : vector<16x64xf32>
    %6 = arith.mulf %5, %5 : vector<16x64xf32>
    %7 = arith.mulf %5, %6 : vector<16x64xf32>
    %cst_5 = arith.constant 4.471500e-02 : f32
    %8 = vector.broadcast %cst_5 : f32 to vector<16x64xf32>
    %9 = arith.mulf %8, %7 : vector<16x64xf32>
    %10 = arith.addf %5, %9 : vector<16x64xf32>
    %cst_6 = arith.constant 0.797884583 : f32
    %11 = vector.broadcast %cst_6 : f32 to vector<16x64xf32>
    %12 = arith.mulf %11, %10 : vector<16x64xf32>
    %13 = math.tanh %12 : vector<16x64xf32>
    %cst_7 = arith.constant 1.000000e+00 : f32
    %14 = vector.broadcast %cst_7 : f32 to vector<16x64xf32>
    %15 = arith.addf %14, %13 : vector<16x64xf32>
    %cst_8 = arith.constant 5.000000e-01 : f32
    %16 = vector.broadcast %cst_8 : f32 to vector<16x64xf32>
    %17 = arith.mulf %16, %15 : vector<16x64xf32>
    %18 = arith.mulf %5, %17 : vector<16x64xf32>
    %19 = arith.truncf %18 : vector<16x64xf32> to vector<16x64xbf16>
    %c0_9 = arith.constant 0 : index
    %c0_10 = arith.constant 0 : index
    %20 = vector.load %arg4[%c0_9, %c0_10] : memref<64x32xbf16, #tpu.memory_space<vmem>>, vector<64x32xbf16>
    %cst_11 = arith.constant dense<0.000000e+00> : vector<16x32xf32>
    %21 = tpu.matmul %19, %20, %cst_11 {dimension_numbers = #tpu.dot_dimension_numbers<[1], [0], [0], [1], [0, 0, 1, 1], [], []>} : vector<16x64xbf16>, vector<64x32xbf16>, vector<16x32xf32> -> vector<16x32xf32>
    %c0_12 = arith.constant 0 : index
    %c0_13 = arith.constant 0 : index
    %22 = vector.load %arg5[%c0_12, %c0_13] : memref<1x32xf32, #tpu.memory_space<vmem>>, vector<1x32xf32>
    %23 = vector.broadcast %22 : vector<1x32xf32> to vector<16x32xf32>
    %24 = arith.addf %21, %23 : vector<16x32xf32>
    %25 = arith.extf %0 : vector<16x32xbf16> to vector<16x32xf32>
    %26 = arith.addf %24, %25 : vector<16x32xf32>
    %cst_14 = arith.constant dense<0.000000e+00> : vector<16xf32>
    %27 = vector.multi_reduction <add>, %26, %cst_14 [1] : vector<16x32xf32> to vector<16xf32>
    %28 = vector.shape_cast %27 : vector<16xf32> to vector<16x1xf32>
    %cst_15 = arith.constant 3.200000e+01 : f32
    %29 = vector.broadcast %cst_15 : f32 to vector<16x1xf32>
    %30 = arith.divf %28, %29 : vector<16x1xf32>
    %31 = vector.broadcast %30 : vector<16x1xf32> to vector<16x32xf32>
    %32 = arith.subf %26, %31 : vector<16x32xf32>
    %33 = arith.mulf %32, %32 : vector<16x32xf32>
    %cst_16 = arith.constant dense<0.000000e+00> : vector<16xf32>
    %34 = vector.multi_reduction <add>, %33, %cst_16 [1] : vector<16x32xf32> to vector<16xf32>
    %35 = vector.shape_cast %34 : vector<16xf32> to vector<16x1xf32>
    %cst_17 = arith.constant 3.200000e+01 : f32
    %36 = vector.broadcast %cst_17 : f32 to vector<16x1xf32>
    %37 = arith.divf %35, %36 : vector<16x1xf32>
    %38 = vector.broadcast %30 : vector<16x1xf32> to vector<16x32xf32>
    %39 = arith.subf %26, %38 : vector<16x32xf32>
    %cst_18 = arith.constant 9.99999996E-13 : f32
    %40 = vector.broadcast %cst_18 : f32 to vector<16x1xf32>
    %41 = arith.addf %37, %40 : vector<16x1xf32>
    %42 = math.rsqrt %41 : vector<16x1xf32>
    %43 = vector.broadcast %42 : vector<16x1xf32> to vector<16x32xf32>
    %44 = arith.mulf %39, %43 : vector<16x32xf32>
    %c0_19 = arith.constant 0 : index
    %c0_20 = arith.constant 0 : index
    %45 = vector.load %arg6[%c0_19, %c0_20] : memref<1x32xf32, #tpu.memory_space<vmem>>, vector<1x32xf32>
    %46 = vector.broadcast %45 : vector<1x32xf32> to vector<16x32xf32>
    %47 = arith.mulf %44, %46 : vector<16x32xf32>
    %c0_21 = arith.constant 0 : index
    %c0_22 = arith.constant 0 : index
    %48 = vector.load %arg7[%c0_21, %c0_22] : memref<1x32xf32, #tpu.memory_space<vmem>>, vector<1x32xf32>
    %49 = vector.broadcast %48 : vector<1x32xf32> to vector<16x32xf32>
    %50 = arith.addf %47, %49 : vector<16x32xf32>
    %51 = arith.truncf %50 : vector<16x32xf32> to vector<16x32xbf16>
    %c0_23 = arith.constant 0 : index
    %c0_24 = arith.constant 0 : index
    %52 = vector.load %arg8[%c0_23, %c0_24] : memref<16x32xbf16, #tpu.memory_space<vmem>>, vector<16x32xbf16>
    tpu.vector_store %arg8[%c0_23, %c0_24], %51 {strides = array<i32>} : memref<16x32xbf16, #tpu.memory_space<vmem>>, vector<16x32xbf16>,
    return
  }
  func.func @transform_0(%arg0: i32) -> (i32, i32) {
    %c0_i32 = arith.constant 0 : i32
    %c0_i32_0 = arith.constant 0 : i32
    return %arg0, %c0_i32 : i32, i32
  }
  func.func @transform_1(%arg0: i32) -> (i32, i32) {
    %c0_i32 = arith.constant 0 : i32
    %c0_i32_0 = arith.constant 0 : i32
    %c0_i32_1 = arith.constant 0 : i32
    return %c0_i32, %c0_i32_0 : i32, i32
  }
  func.func @transform_2(%arg0: i32) -> (i32, i32) {
    %c0_i32 = arith.constant 0 : i32
    %c0_i32_0 = arith.constant 0 : i32
    %c0_i32_1 = arith.constant 0 : i32
    return %c0_i32, %c0_i32_0 : i32, i32
  }
  func.func @transform_3(%arg0: i32) -> (i32, i32) {
    %c0_i32 = arith.constant 0 : i32
    %c0_i32_0 = arith.constant 0 : i32
    %c0_i32_1 = arith.constant 0 : i32
    return %c0_i32, %c0_i32_0 : i32, i32
  }
  func.func @transform_4(%arg0: i32) -> (i32, i32) {
    %c0_i32 = arith.constant 0 : i32
    %c0_i32_0 = arith.constant 0 : i32
    %c0_i32_1 = arith.constant 0 : i32
    return %c0_i32, %c0_i32_0 : i32, i32
  }
  func.func @transform_5(%arg0: i32) -> (i32, i32) {
    %c0_i32 = arith.constant 0 : i32
    %c0_i32_0 = arith.constant 0 : i32
    %c0_i32_1 = arith.constant 0 : i32
    return %c0_i32, %c0_i32_0 : i32, i32
  }
  func.func @transform_6(%arg0: i32) -> (i32, i32) {
    %c0_i32 = arith.constant 0 : i32
    %c0_i32_0 = arith.constant 0 : i32
    %c0_i32_1 = arith.constant 0 : i32
    return %c0_i32, %c0_i32_0 : i32, i32
  }
  func.func @transform_7(%arg0: i32) -> (i32, i32) {
    %c0_i32 = arith.constant 0 : i32
    %c0_i32_0 = arith.constant 0 : i32
    return %arg0, %c0_i32 : i32, i32
  }
}

module attributes {stable_mosaic.version = 11 : i64} {
  func.func @_pool_fc_kernel(%arg0: memref<2x8x32xbf16, #tpu.memory_space<vmem>>, %arg1: memref<32x128xbf16, #tpu.memory_space<vmem>>, %arg2: memref<1x128xf32, #tpu.memory_space<vmem>>, %arg3: memref<2x128xf32, #tpu.memory_space<vmem>>) attributes {dimension_semantics = [], scalar_prefetch = 0 : i64, scratch_operands = 0 : i64, tpu.core_type = #tpu.core_type<tc>} {
    %c0 = arith.constant 0 : index
    %c0_0 = arith.constant 0 : index
    %c0_1 = arith.constant 0 : index
    %0 = vector.load %arg0[%c0, %c0_0, %c0_1] : memref<2x8x32xbf16, #tpu.memory_space<vmem>>, vector<2x8x32xbf16>
    %1 = arith.extf %0 : vector<2x8x32xbf16> to vector<2x8x32xf32>
    %cst = arith.constant dense<0.000000e+00> : vector<2x32xf32>
    %2 = vector.multi_reduction <add>, %1, %cst [1] : vector<2x8x32xf32> to vector<2x32xf32>
    %cst_2 = arith.constant 8.000000e+00 : f32
    %3 = vector.broadcast %cst_2 : f32 to vector<2x32xf32>
    %4 = arith.divf %2, %3 : vector<2x32xf32>
    %5 = arith.truncf %4 : vector<2x32xf32> to vector<2x32xbf16>
    %c0_3 = arith.constant 0 : index
    %c0_4 = arith.constant 0 : index
    %6 = vector.load %arg1[%c0_3, %c0_4] : memref<32x128xbf16, #tpu.memory_space<vmem>>, vector<32x128xbf16>
    %cst_5 = arith.constant dense<0.000000e+00> : vector<2x128xf32>
    %7 = tpu.matmul %5, %6, %cst_5 {dimension_numbers = #tpu.dot_dimension_numbers<[1], [0], [0], [1], [0, 0, 1, 1], [], []>} : vector<2x32xbf16>, vector<32x128xbf16>, vector<2x128xf32> -> vector<2x128xf32>
    %c0_6 = arith.constant 0 : index
    %c0_7 = arith.constant 0 : index
    %8 = vector.load %arg2[%c0_6, %c0_7] : memref<1x128xf32, #tpu.memory_space<vmem>>, vector<1x128xf32>
    %9 = vector.broadcast %8 : vector<1x128xf32> to vector<2x128xf32>
    %10 = arith.addf %7, %9 : vector<2x128xf32>
    %c0_8 = arith.constant 0 : index
    %c0_9 = arith.constant 0 : index
    %11 = vector.load %arg3[%c0_8, %c0_9] : memref<2x128xf32, #tpu.memory_space<vmem>>, vector<2x128xf32>
    tpu.vector_store %arg3[%c0_8, %c0_9], %10 {strides = array<i32>} : memref<2x128xf32, #tpu.memory_space<vmem>>, vector<2x128xf32>,
    return
  }
}

module attributes {stable_mosaic.version = 11 : i64} {
  func.func @_attn_block_kernel(%arg0: i32, %arg1: memref<1x8x32xbf16, #tpu.memory_space<vmem>>, %arg2: memref<1x1x8xf32, #tpu.memory_space<vmem>>, %arg3: memref<32x96xbf16, #tpu.memory_space<vmem>>, %arg4: memref<1x96xf32, #tpu.memory_space<vmem>>, %arg5: memref<32x32xbf16, #tpu.memory_space<vmem>>, %arg6: memref<1x32xf32, #tpu.memory_space<vmem>>, %arg7: memref<1x32xf32, #tpu.memory_space<vmem>>, %arg8: memref<1x32xf32, #tpu.memory_space<vmem>>, %arg9: memref<1x8x32xbf16, #tpu.memory_space<vmem>>) attributes {dimension_semantics = [#tpu.dimension_semantics<parallel>], iteration_bounds = array<i64: 2>, scalar_prefetch = 0 : i64, scratch_operands = 0 : i64, tpu.core_type = #tpu.core_type<tc>, window_params = [{transform_indices = @transform_0, window_bounds = array<i64: 1, 8, 32>}, {transform_indices = @transform_1, window_bounds = array<i64: 1, 1, 8>}, {pipeline_mode = #tpu.pipeline_mode<synchronous>, transform_indices = @transform_2, window_bounds = array<i64: 32, 96>}, {pipeline_mode = #tpu.pipeline_mode<synchronous>, transform_indices = @transform_3, window_bounds = array<i64: 1, 96>}, {pipeline_mode = #tpu.pipeline_mode<synchronous>, transform_indices = @transform_4, window_bounds = array<i64: 32, 32>}, {pipeline_mode = #tpu.pipeline_mode<synchronous>, transform_indices = @transform_5, window_bounds = array<i64: 1, 32>}, {pipeline_mode = #tpu.pipeline_mode<synchronous>, transform_indices = @transform_6, window_bounds = array<i64: 1, 32>}, {pipeline_mode = #tpu.pipeline_mode<synchronous>, transform_indices = @transform_7, window_bounds = array<i64: 1, 32>}, {transform_indices = @transform_8, window_bounds = array<i64: 1, 8, 32>}]} {
    %c0 = arith.constant 0 : index
    %c0_0 = arith.constant 0 : index
    %c0_1 = arith.constant 0 : index
    %0 = vector.load %arg1[%c0, %c0_0, %c0_1] : memref<1x8x32xbf16, #tpu.memory_space<vmem>>, vector<1x8x32xbf16>
    %1 = vector.shape_cast %0 : vector<1x8x32xbf16> to vector<8x32xbf16>
    %c0_2 = arith.constant 0 : index
    %c0_3 = arith.constant 0 : index
    %c0_4 = arith.constant 0 : index
    %2 = vector.load %arg2[%c0_2, %c0_3, %c0_4] : memref<1x1x8xf32, #tpu.memory_space<vmem>>, vector<1x1x8xf32>
    %3 = vector.shape_cast %2 : vector<1x1x8xf32> to vector<1x8xf32>
    %c0_5 = arith.constant 0 : index
    %c0_6 = arith.constant 0 : index
    %4 = vector.load %arg3[%c0_5, %c0_6] : memref<32x96xbf16, #tpu.memory_space<vmem>>, vector<32x96xbf16>
    %cst = arith.constant dense<0.000000e+00> : vector<8x96xf32>
    %5 = tpu.matmul %1, %4, %cst {dimension_numbers = #tpu.dot_dimension_numbers<[1], [0], [0], [1], [0, 0, 1, 1], [], []>} : vector<8x32xbf16>, vector<32x96xbf16>, vector<8x96xf32> -> vector<8x96xf32>
    %c0_7 = arith.constant 0 : index
    %c0_8 = arith.constant 0 : index
    %6 = vector.load %arg4[%c0_7, %c0_8] : memref<1x96xf32, #tpu.memory_space<vmem>>, vector<1x96xf32>
    %7 = vector.broadcast %6 : vector<1x96xf32> to vector<8x96xf32>
    %8 = arith.addf %5, %7 : vector<8x96xf32>
    %9 = arith.truncf %8 : vector<8x96xf32> to vector<8x96xbf16>
    %10 = vector.extract_strided_slice %9 {offsets = [0, 0], sizes = [8, 16], strides = [1, 1]} : vector<8x96xbf16> to vector<8x16xbf16>
    %11 = vector.extract_strided_slice %9 {offsets = [0, 32], sizes = [8, 16], strides = [1, 1]} : vector<8x96xbf16> to vector<8x16xbf16>
    %12 = vector.extract_strided_slice %9 {offsets = [0, 64], sizes = [8, 16], strides = [1, 1]} : vector<8x96xbf16> to vector<8x16xbf16>
    %cst_9 = arith.constant dense<0.000000e+00> : vector<8x8xf32>
    %13 = tpu.matmul %10, %11, %cst_9 {dimension_numbers = #tpu.dot_dimension_numbers<[1], [1], [0], [0], [0, 0, 1, 0], [], []>} : vector<8x16xbf16>, vector<8x16xbf16>, vector<8x8xf32> -> vector<8x8xf32>
    %cst_10 = arith.constant 2.500000e-01 : f32
    %14 = vector.broadcast %cst_10 : f32 to vector<8x8xf32>
    %15 = arith.mulf %13, %14 : vector<8x8xf32>
    %cst_11 = arith.constant 5.000000e-01 : f32
    %16 = vector.broadcast %cst_11 : f32 to vector<1x8xf32>
    %17 = arith.cmpf ogt, %3, %16 : vector<1x8xf32>
    %cst_12 = arith.constant -3.40282347E+38 : f32
    %18 = vector.shape_cast %17 : vector<1x8xi1> to vector<1x8xi1>
    %19 = vector.broadcast %18 : vector<1x8xi1> to vector<8x8xi1>
    %20 = vector.broadcast %cst_12 : f32 to vector<8x8xf32>
    %21 = arith.select %19, %15, %20 : vector<8x8xi1>, vector<8x8xf32>
    %cst_13 = arith.constant dense<0xFF800000> : vector<8xf32>
    %22 = vector.multi_reduction <maximumf>, %21, %cst_13 [1] : vector<8x8xf32> to vector<8xf32>
    %23 = vector.shape_cast %22 : vector<8xf32> to vector<8x1xf32>
    %24 = vector.broadcast %23 : vector<8x1xf32> to vector<8x8xf32>
    %25 = arith.subf %21, %24 : vector<8x8xf32>
    %26 = math.exp %25 : vector<8x8xf32>
    %cst_14 = arith.constant dense<0.000000e+00> : vector<8xf32>
    %27 = vector.multi_reduction <add>, %26, %cst_14 [1] : vector<8x8xf32> to vector<8xf32>
    %28 = vector.shape_cast %27 : vector<8xf32> to vector<8x1xf32>
    %29 = tpu.reciprocal %28 {approx = true} : vector<8x1xf32> -> vector<8x1xf32>
    %30 = vector.broadcast %29 : vector<8x1xf32> to vector<8x8xf32>
    %31 = arith.mulf %26, %30 : vector<8x8xf32>
    %32 = arith.truncf %31 : vector<8x8xf32> to vector<8x8xbf16>
    %cst_15 = arith.constant dense<0.000000e+00> : vector<8x16xf32>
    %33 = tpu.matmul %32, %12, %cst_15 {dimension_numbers = #tpu.dot_dimension_numbers<[1], [0], [0], [1], [0, 0, 1, 1], [], []>} : vector<8x8xbf16>, vector<8x16xbf16>, vector<8x16xf32> -> vector<8x16xf32>
    %34 = vector.extract_strided_slice %9 {offsets = [0, 16], sizes = [8, 16], strides = [1, 1]} : vector<8x96xbf16> to vector<8x16xbf16>
    %35 = vector.extract_strided_slice %9 {offsets = [0, 48], sizes = [8, 16], strides = [1, 1]} : vector<8x96xbf16> to vector<8x16xbf16>
    %36 = vector.extract_strided_slice %9 {offsets = [0, 80], sizes = [8, 16], strides = [1, 1]} : vector<8x96xbf16> to vector<8x16xbf16>
    %cst_16 = arith.constant dense<0.000000e+00> : vector<8x8xf32>
    %37 = tpu.matmul %34, %35, %cst_16 {dimension_numbers = #tpu.dot_dimension_numbers<[1], [1], [0], [0], [0, 0, 1, 0], [], []>} : vector<8x16xbf16>, vector<8x16xbf16>, vector<8x8xf32> -> vector<8x8xf32>
    %cst_17 = arith.constant 2.500000e-01 : f32
    %38 = vector.broadcast %cst_17 : f32 to vector<8x8xf32>
    %39 = arith.mulf %37, %38 : vector<8x8xf32>
    %cst_18 = arith.constant 5.000000e-01 : f32
    %40 = vector.broadcast %cst_18 : f32 to vector<1x8xf32>
    %41 = arith.cmpf ogt, %3, %40 : vector<1x8xf32>
    %cst_19 = arith.constant -3.40282347E+38 : f32
    %42 = vector.shape_cast %41 : vector<1x8xi1> to vector<1x8xi1>
    %43 = vector.broadcast %42 : vector<1x8xi1> to vector<8x8xi1>
    %44 = vector.broadcast %cst_19 : f32 to vector<8x8xf32>
    %45 = arith.select %43, %39, %44 : vector<8x8xi1>, vector<8x8xf32>
    %cst_20 = arith.constant dense<0xFF800000> : vector<8xf32>
    %46 = vector.multi_reduction <maximumf>, %45, %cst_20 [1] : vector<8x8xf32> to vector<8xf32>
    %47 = vector.shape_cast %46 : vector<8xf32> to vector<8x1xf32>
    %48 = vector.broadcast %47 : vector<8x1xf32> to vector<8x8xf32>
    %49 = arith.subf %45, %48 : vector<8x8xf32>
    %50 = math.exp %49 : vector<8x8xf32>
    %cst_21 = arith.constant dense<0.000000e+00> : vector<8xf32>
    %51 = vector.multi_reduction <add>, %50, %cst_21 [1] : vector<8x8xf32> to vector<8xf32>
    %52 = vector.shape_cast %51 : vector<8xf32> to vector<8x1xf32>
    %53 = tpu.reciprocal %52 {approx = true} : vector<8x1xf32> -> vector<8x1xf32>
    %54 = vector.broadcast %53 : vector<8x1xf32> to vector<8x8xf32>
    %55 = arith.mulf %50, %54 : vector<8x8xf32>
    %56 = arith.truncf %55 : vector<8x8xf32> to vector<8x8xbf16>
    %cst_22 = arith.constant dense<0.000000e+00> : vector<8x16xf32>
    %57 = tpu.matmul %56, %36, %cst_22 {dimension_numbers = #tpu.dot_dimension_numbers<[1], [0], [0], [1], [0, 0, 1, 1], [], []>} : vector<8x8xbf16>, vector<8x16xbf16>, vector<8x16xf32> -> vector<8x16xf32>
    %58 = tpu.concatenate %33, %57 in 1 : vector<8x16xf32>, vector<8x16xf32> -> vector<8x32xf32>
    %59 = arith.truncf %58 : vector<8x32xf32> to vector<8x32xbf16>
    %c0_23 = arith.constant 0 : index
    %c0_24 = arith.constant 0 : index
    %60 = vector.load %arg5[%c0_23, %c0_24] : memref<32x32xbf16, #tpu.memory_space<vmem>>, vector<32x32xbf16>
    %cst_25 = arith.constant dense<0.000000e+00> : vector<8x32xf32>
    %61 = tpu.matmul %59, %60, %cst_25 {dimension_numbers = #tpu.dot_dimension_numbers<[1], [0], [0], [1], [0, 0, 1, 1], [], []>} : vector<8x32xbf16>, vector<32x32xbf16>, vector<8x32xf32> -> vector<8x32xf32>
    %c0_26 = arith.constant 0 : index
    %c0_27 = arith.constant 0 : index
    %62 = vector.load %arg6[%c0_26, %c0_27] : memref<1x32xf32, #tpu.memory_space<vmem>>, vector<1x32xf32>
    %63 = vector.broadcast %62 : vector<1x32xf32> to vector<8x32xf32>
    %64 = arith.addf %61, %63 : vector<8x32xf32>
    %65 = arith.extf %1 : vector<8x32xbf16> to vector<8x32xf32>
    %66 = arith.addf %64, %65 : vector<8x32xf32>
    %cst_28 = arith.constant dense<0.000000e+00> : vector<8xf32>
    %67 = vector.multi_reduction <add>, %66, %cst_28 [1] : vector<8x32xf32> to vector<8xf32>
    %68 = vector.shape_cast %67 : vector<8xf32> to vector<8x1xf32>
    %cst_29 = arith.constant 3.200000e+01 : f32
    %69 = vector.broadcast %cst_29 : f32 to vector<8x1xf32>
    %70 = arith.divf %68, %69 : vector<8x1xf32>
    %71 = vector.broadcast %70 : vector<8x1xf32> to vector<8x32xf32>
    %72 = arith.subf %66, %71 : vector<8x32xf32>
    %73 = arith.mulf %72, %72 : vector<8x32xf32>
    %cst_30 = arith.constant dense<0.000000e+00> : vector<8xf32>
    %74 = vector.multi_reduction <add>, %73, %cst_30 [1] : vector<8x32xf32> to vector<8xf32>
    %75 = vector.shape_cast %74 : vector<8xf32> to vector<8x1xf32>
    %cst_31 = arith.constant 3.200000e+01 : f32
    %76 = vector.broadcast %cst_31 : f32 to vector<8x1xf32>
    %77 = arith.divf %75, %76 : vector<8x1xf32>
    %78 = vector.broadcast %70 : vector<8x1xf32> to vector<8x32xf32>
    %79 = arith.subf %66, %78 : vector<8x32xf32>
    %cst_32 = arith.constant 9.99999996E-13 : f32
    %80 = vector.broadcast %cst_32 : f32 to vector<8x1xf32>
    %81 = arith.addf %77, %80 : vector<8x1xf32>
    %82 = math.rsqrt %81 : vector<8x1xf32>
    %83 = vector.broadcast %82 : vector<8x1xf32> to vector<8x32xf32>
    %84 = arith.mulf %79, %83 : vector<8x32xf32>
    %c0_33 = arith.constant 0 : index
    %c0_34 = arith.constant 0 : index
    %85 = vector.load %arg7[%c0_33, %c0_34] : memref<1x32xf32, #tpu.memory_space<vmem>>, vector<1x32xf32>
    %86 = vector.broadcast %85 : vector<1x32xf32> to vector<8x32xf32>
    %87 = arith.mulf %84, %86 : vector<8x32xf32>
    %c0_35 = arith.constant 0 : index
    %c0_36 = arith.constant 0 : index
    %88 = vector.load %arg8[%c0_35, %c0_36] : memref<1x32xf32, #tpu.memory_space<vmem>>, vector<1x32xf32>
    %89 = vector.broadcast %88 : vector<1x32xf32> to vector<8x32xf32>
    %90 = arith.addf %87, %89 : vector<8x32xf32>
    %91 = arith.truncf %90 : vector<8x32xf32> to vector<8x32xbf16>
    %c0_37 = arith.constant 0 : index
    %c0_38 = arith.constant 0 : index
    %c0_39 = arith.constant 0 : index
    %92 = vector.load %arg9[%c0_37, %c0_38, %c0_39] : memref<1x8x32xbf16, #tpu.memory_space<vmem>>, vector<1x8x32xbf16>
    %93 = vector.shape_cast %92 : vector<1x8x32xbf16> to vector<8x32xbf16>
    %94 = vector.shape_cast %91 : vector<8x32xbf16> to vector<1x8x32xbf16>
    tpu.vector_store %arg9[%c0_37, %c0_38, %c0_39], %94 {strides = array<i32>} : memref<1x8x32xbf16, #tpu.memory_space<vmem>>, vector<1x8x32xbf16>,
    return
  }
  func.func @transform_0(%arg0: i32) -> (i32, i32, i32) {
    %c0_i32 = arith.constant 0 : i32
    %c0_i32_0 = arith.constant 0 : i32
    %c0_i32_1 = arith.constant 0 : i32
    return %arg0, %c0_i32, %c0_i32_0 : i32, i32, i32
  }
  func.func @transform_1(%arg0: i32) -> (i32, i32, i32) {
    %c0_i32 = arith.constant 0 : i32
    %c0_i32_0 = arith.constant 0 : i32
    %c0_i32_1 = arith.constant 0 : i32
    return %arg0, %c0_i32, %c0_i32_0 : i32, i32, i32
  }
  func.func @transform_2(%arg0: i32) -> (i32, i32) {
    %c0_i32 = arith.constant 0 : i32
    %c0_i32_0 = arith.constant 0 : i32
    %c0_i32_1 = arith.constant 0 : i32
    return %c0_i32, %c0_i32_0 : i32, i32
  }
  func.func @transform_3(%arg0: i32) -> (i32, i32) {
    %c0_i32 = arith.constant 0 : i32
    %c0_i32_0 = arith.constant 0 : i32
    %c0_i32_1 = arith.constant 0 : i32
    return %c0_i32, %c0_i32_0 : i32, i32
  }
  func.func @transform_4(%arg0: i32) -> (i32, i32) {
    %c0_i32 = arith.constant 0 : i32
    %c0_i32_0 = arith.constant 0 : i32
    %c0_i32_1 = arith.constant 0 : i32
    return %c0_i32, %c0_i32_0 : i32, i32
  }
  func.func @transform_5(%arg0: i32) -> (i32, i32) {
    %c0_i32 = arith.constant 0 : i32
    %c0_i32_0 = arith.constant 0 : i32
    %c0_i32_1 = arith.constant 0 : i32
    return %c0_i32, %c0_i32_0 : i32, i32
  }
  func.func @transform_6(%arg0: i32) -> (i32, i32) {
    %c0_i32 = arith.constant 0 : i32
    %c0_i32_0 = arith.constant 0 : i32
    %c0_i32_1 = arith.constant 0 : i32
    return %c0_i32, %c0_i32_0 : i32, i32
  }
  func.func @transform_7(%arg0: i32) -> (i32, i32) {
    %c0_i32 = arith.constant 0 : i32
    %c0_i32_0 = arith.constant 0 : i32
    %c0_i32_1 = arith.constant 0 : i32
    return %c0_i32, %c0_i32_0 : i32, i32
  }
  func.func @transform_8(%arg0: i32) -> (i32, i32, i32) {
    %c0_i32 = arith.constant 0 : i32
    %c0_i32_0 = arith.constant 0 : i32
    %c0_i32_1 = arith.constant 0 : i32
    return %arg0, %c0_i32, %c0_i32_0 : i32, i32, i32
  }
}

</mosaic_0001>

<llo_original>
// kernel: intent_classifier_forward.11
$region0: #{intent_classifier_forward.11}
  #allocation0 [shape = 'u32[]', space=smem, size = 0x4, offset = 0x4, fixed_abs, tag = 'smem constant byte address 0x4 - core index']
  #allocation1 [shape = 'u32[144,128]{1,0:T(1,128)}', space=vmem, size = 0x12000, scoped, tag = 'internal scratch']
  %s0 = inlined_call_operand.vmem [shape: bf16[2,8,32], index: 0, kind: input, shape index: {}]
  %s1 = inlined_call_operand.vmem [shape: bf16[32,128], index: 1, kind: input, shape index: {}]
  %s2 = inlined_call_operand.vmem [shape: f32[1,128], index: 2, kind: input, shape index: {}]
  %s3 = inlined_call_operand.hbm [shape: f32[2,128], index: 3, kind: output, shape index: {}]
  %s4 = sld [smem:[#allocation0]]
  $region22: #{intent_classifier_forward.11} parent=0
    _
  %s6 = ssub.s32 1, %s4
  %s7 = scalar_select 0, %s6, %s4
  $region1: #{intent_classifier_forward.11} parent=0
    #allocation2 [shape = 'u8[1024]{0}', space=vmem, size = 0x400, scoped, tag = 'output window, operand 0, single buffered']
    #allocation3 [shape = 's32[1]{0}', space=sflag, size = 0x4, scoped, tag = 'scoped memory for intent_classifier_forward.11']
    %8 = vsyncpa [#allocation3], 0
    // Predicated region
    $region2: #{intent_classifier_forward.11} parent=1 // pred_check
      _
    $region3: #{intent_classifier_forward.11} parent=1 // pred_check_branch
      %10 = sbr.rel (0) target = $region5
    $region4: #{intent_classifier_forward.11} parent=1 // pred_region
      _
    $region5: #{intent_classifier_forward.11} parent=1 // pred_fallthru
      _
    // Predicated region
    $region6: #{intent_classifier_forward.11} parent=1 // pred_check
      _
    $region7: #{intent_classifier_forward.11} parent=1 // pred_check_branch
      %12 = sbr.rel (0) target = $region9
    $region8: #{intent_classifier_forward.11} parent=1 // pred_region
      _
    $region9: #{intent_classifier_forward.11} parent=1 // pred_fallthru
      _
    // Predicated region
    $region10: #{intent_classifier_forward.11} parent=1 // pred_check
      _
    $region11: #{intent_classifier_forward.11} parent=1 // pred_check_branch
      %14 = sbr.rel (0) target = $region13
    $region12: #{intent_classifier_forward.11} parent=1 // pred_region
      _
    $region13: #{intent_classifier_forward.11} parent=1 // pred_fallthru
      _
    %v16 = vld [vmem:[%s0] sm:$0xf]
    %v17 = vld [vmem:[%s0 + $0x4] sm:$0xf]
    %v18 = vunpack.c.l.bf16 %v16
    %v19 = vunpack.c.l.bf16 %v17
    %vm20 = vcmask 261120
    %v21 = vsel %vm20, %v18, 0.0
    %v22 = vrot.slane %v21, 4
    %v23 = vadd.f32 %v21, %v22
    %v24 = vrot.slane %v23, 2
    %v25 = vadd.f32 %v23, %v24
    %v26 = vrot.slane %v25, 1
    %v27 = vadd.f32 %v25, %v26
    %v28 = vsel %vm20, %v19, 0.0
    %v29 = vrot.slane %v28, 4
    %v30 = vadd.f32 %v28, %v29
    %v31 = vrot.slane %v30, 2
    %v32 = vadd.f32 %v30, %v31
    %v33 = vrot.slane %v32, 1
    %v34 = vadd.f32 %v32, %v33
    %v35 = vrcp.pop 8.0
    %v36 = vmul.f32 %v27, %v35
    %v37 = vmul.f32 %v34, %v35
    %v38 = vpack.c.bf16 %v36, %v36
    %v39 = vpack.c.bf16 %v37, %v37
    %v40 = vld [vmem:[%s1] sm:$0xf]
    %v41 = vld [vmem:[%s1 + $0x4] sm:$0xf]
    %v42 = vld [vmem:[%s1 + $0x8] sm:$0xf]
    %v43 = vld [vmem:[%s1 + $0xc] sm:$0xf]
    %v44 = vld [vmem:[%s2] sm:$0x1]
    %v46 = vlaneseq
    %v47 = vshrl.u32 %v46, 7
    %v48 = vsub.s32 0, %v47
    %v49 = vrot.slane %v44, %v48
    %v53 = vunpack.c.l.b16 %v38
    %v54 = vunpack.c.l.b16 %v39
    %vm55 = vcmask 1041409
    %v56 = vsel %vm55, %v54, %v53
    %v57 = vpack.c.b16 %v56, %v56
    %v62 = vunpack.c.l.b16 %v40
    %v63 = vunpack.c.l.b16 %v41
    %v64 = vunpack.c.l.b16 %v42
    %v65 = vunpack.c.l.b16 %v43
    %v66 = vpack.c.b16 %v63, %v62
    %v67 = vpack.c.b16 %v65, %v64
    %v71 = vsel %vm20, %v57, 0
    %73 = vmatprep.subr.bf16.mxu0 0
    %74 = vmatpush1.bf16.msra.mxu0 0
    %75 = vmatprep.subr.bf16.mxu0 0
    %76 = vmatpush1.bf16.msra.mxu0 0
    %77 = vmatprep.subr.bf16.mxu0 0
    %78 = vmatpush1.bf16.msra.mxu0 0
    %79 = vmatprep.subr.bf16.mxu0 0
    %80 = vmatpush1.bf16.msra.mxu0 0
    %81 = vmatprep.subr.bf16.mxu0 0
    %82 = vmatpush1.bf16.msra.mxu0 0
    %83 = vmatprep.subr.bf16.mxu0 0
    %84 = vmatpush1.bf16.msra.mxu0 0
    %85 = vmatprep.subr.bf16.mxu0 0
    %86 = vmatpush1.bf16.msra.mxu0 %v67
    %87 = vmatprep.subr.bf16.mxu0 0
    %88 = vmatpush1.bf16.msra.mxu0 %v66
    %89 = vmatprep.subr.bf16.mxu0 0
    %90 = vmatpush2.bf16.msra.mxu0 0
    %91 = vmatprep.subr.bf16.mxu0 0
    %92 = vmatpush2.bf16.msra.mxu0 0
    %93 = vmatprep.subr.bf16.mxu0 0
    %94 = vmatpush2.bf16.msra.mxu0 0
    %95 = vmatprep.subr.bf16.mxu0 0
    %96 = vmatpush2.bf16.msra.mxu0 0
    %97 = vmatprep.subr.bf16.mxu0 0
    %98 = vmatpush2.bf16.msra.mxu0 0
    %99 = vmatprep.subr.bf16.mxu0 0
    %100 = vmatpush2.bf16.msra.mxu0 0
    %101 = vmatprep.subr.bf16.mxu0 0
    %102 = vmatpush2.bf16.msra.mxu0 0
    %103 = vmatprep.subr.bf16.mxu0 0
    %104 = vmatpush2.bf16.msra.mxu0 0
    %105 = vmatprep.mubr.bf16.mxu0 0
    %106 = vmatmul.mubr.bf16.gmra.mxu0 %v71
    %v107 = vpop.f32.mrf.mxu0
    %v108 = vadd.f32 %v49, %v107
    %v109 = vpop.f32.mrf.mxu0
    %v110 = vpop.f32.mrf.mxu0
    %v111 = vpop.f32.mrf.mxu0
    %112 = vdwg.mxu0
    %113 = vst [vmem:[#allocation2] sm:$0x3] %v108
    // Predicated region
    $region14: #{intent_classifier_forward.11} parent=1 // pred_check
      _
    $region15: #{intent_classifier_forward.11} parent=1 // pred_check_branch
      %115 = sbr.rel (0) target = $region17
    $region16: #{intent_classifier_forward.11} parent=1 // pred_region
      %s117 = ssub.s32 32, 32
      %118 = vsyncadd [#allocation3], %s117
      %s120 = sshll.u32 [#allocation2], 4
      %s121 = int_to_ptr.vmem [resolvable:$true] %s120
      %123 = dma.vmem_to_hbm [thread:$0]  %s121, 32, %s3, [#allocation3]
    $region17: #{intent_classifier_forward.11} parent=1 // pred_fallthru
      _
    // Predicated region
    $region18: #{intent_classifier_forward.11} parent=1 // pred_check
      _
    $region19: #{intent_classifier_forward.11} parent=1 // pred_check_branch
      %125 = sbr.rel (0) target = $region21
    $region20: #{intent_classifier_forward.11} parent=1 // pred_region
      %126 = dma.done [#allocation3], 32
    $region21: #{intent_classifier_forward.11} parent=1 // pred_fallthru
      _
    %127 = vsyncpa [#allocation3], 1

// kernel: intent_classifier_forward.6
$region0: #{intent_classifier_forward.6}
  #allocation0 [shape = 'u32[]', space=smem, size = 0x4, offset = 0x4, fixed_abs, tag = 'smem constant byte address 0x4 - core index']
  #allocation1 [shape = 'u32[144,128]{1,0:T(1,128)}', space=vmem, size = 0x12000, scoped, tag = 'internal scratch']
  %s0 = inlined_call_operand.vmem [shape: f32[16,32], index: 0, kind: input, shape index: {}]
  %s1 = inlined_call_operand.vmem [shape: f32[1,32], index: 1, kind: input, shape index: {}]
  %s2 = inlined_call_operand.vmem [shape: f32[1,32], index: 2, kind: input, shape index: {}]
  %s3 = inlined_call_operand.vmem [shape: bf16[16,32], index: 3, kind: output, shape index: {}]
  %s4 = sld [smem:[#allocation0]]
  $region22: #{intent_classifier_forward.6} parent=0
    _
  %s6 = ssub.s32 1, %s4
  %s7 = scalar_select 0, %s6, %s4
  // Predicated region
  $region2: #{intent_classifier_forward.6} parent=0 // pred_check
    _
  $region3: #{intent_classifier_forward.6} parent=0 // pred_check_branch
    %9 = sbr.rel (0) target = $region5
  $region4: #{intent_classifier_forward.6} parent=0 // pred_region
    _
  $region5: #{intent_classifier_forward.6} parent=0 // pred_fallthru
    _
  // Predicated region
  $region6: #{intent_classifier_forward.6} parent=0 // pred_check
    _
  $region7: #{intent_classifier_forward.6} parent=0 // pred_check_branch
    %11 = sbr.rel (0) target = $region9
  $region8: #{intent_classifier_forward.6} parent=0 // pred_region
    _
  $region9: #{intent_classifier_forward.6} parent=0 // pred_fallthru
    _
  // Predicated region
  $region10: #{intent_classifier_forward.6} parent=0 // pred_check
    _
  $region11: #{intent_classifier_forward.6} parent=0 // pred_check_branch
    %13 = sbr.rel (0) target = $region13
  $region12: #{intent_classifier_forward.6} parent=0 // pred_region
    _
  $region13: #{intent_classifier_forward.6} parent=0 // pred_fallthru
    _
  %v14 = vld [vmem:[%s0] sm:$0xff]
  %v15 = vld [vmem:[%s0 + $0x8] sm:$0xff]
  %vm16 = vcmask 261120
  %v17 = vsel %vm16, %v14, 0.0
  %18 = vadd.xlane.f32.xlu0 %v17
  %v19 = vpop.xlane.xlu0 %18
  %v20 = vsel %vm16, %v15, 0.0
  %21 = vadd.xlane.f32.xlu0 %v20
  %v22 = vpop.xlane.xlu0 %21
  %v23 = vrcp.pop 32.0
  %v24 = vmul.f32 %v19, %v23
  %v25 = vmul.f32 %v22, %v23
  %v26 = vsub.f32 %v14, %v24
  %v27 = vsub.f32 %v15, %v25
  %v28 = vmul.f32 %v26, %v26
  %v29 = vmul.f32 %v27, %v27
  %v30 = vsel %vm16, %v28, 0.0
  %31 = vadd.xlane.f32.xlu0 %v30
  %v32 = vpop.xlane.xlu0 %31
  %v33 = vsel %vm16, %v29, 0.0
  %34 = vadd.xlane.f32.xlu0 %v33
  %v35 = vpop.xlane.xlu0 %34
  %v36 = vmul.f32 %v32, %v23
  %v37 = vmul.f32 %v35, %v23
  %v38 = vadd.f32 %v36, 1e-12
  %v39 = vadd.f32 %v37, 1e-12
  %v40 = vrsqrt.pop %v38
  %v41 = vrsqrt.pop %v39
  %v42 = vmul.f32 %v26, %v40
  %v43 = vmul.f32 %v27, %v41
  %v44 = vld [vmem:[%s1] sm:$0x1]
  %v46 = vlaneseq
  %v47 = vshrl.u32 %v46, 7
  %v48 = vsub.s32 0, %v47
  %v49 = vrot.slane %v44, %v48
  %v51 = vmul.f32 %v42, %v49
  %v52 = vmul.f32 %v43, %v49
  %v53 = vld [vmem:[%s2] sm:$0x1]
  %v55 = vlaneseq
  %v56 = vshrl.u32 %v55, 7
  %v57 = vsub.s32 0, %v56
  %v58 = vrot.slane %v53, %v57
  %v60 = vadd.f32 %v51, %v58
  %v61 = vadd.f32 %v52, %v58
  %v62 = vpack.c.bf16 %v61, %v60
  %v64 = vunpack.c.l.b16 %v62
  %v65 = vunpack.c.h.b16 %v62
  %v66 = vpack.c.b16 %v64, %v64
  %v67 = vpack.c.b16 %v65, %v65
  %vm70 = vcmask 257024
  %71 = vst.msk [vmem:[%s3] sm:$0xf] %vm70, %v66
  %72 = vst.msk [vmem:[%s3 + $0x4] sm:$0xf] %vm70, %v67
  // Predicated region
  $region14: #{intent_classifier_forward.6} parent=0 // pred_check
    _
  $region15: #{intent_classifier_forward.6} parent=0 // pred_check_branch
    %74 = sbr.rel (0) target = $region17
  $region16: #{intent_classifier_forward.6} parent=0 // pred_region
    _
  $region17: #{intent_classifier_forward.6} parent=0 // pred_fallthru
    _
  // Predicated region
  $region18: #{intent_classifier_forward.6} parent=0 // pred_check
    _
  $region19: #{intent_classifier_forward.6} parent=0 // pred_check_branch
    %76 = sbr.rel (0) target = $region21
  $region20: #{intent_classifier_forward.6} parent=0 // pred_region
    _
  $region21: #{intent_classifier_forward.6} parent=0 // pred_fallthru
    _

// kernel: intent_classifier_forward.8
$region0: #{intent_classifier_forward.8}
  #allocation0 [shape = 'u32[]', space=smem, size = 0x4, offset = 0x4, fixed_abs, tag = 'smem constant byte address 0x4 - core index']
  #allocation1 [shape = 'u32[144,128]{1,0:T(1,128)}', space=vmem, size = 0x12000, scoped, tag = 'internal scratch']
  %s0 = inlined_call_operand.vmem [shape: bf16[16,32], index: 0, kind: input, shape index: {}]
  %s1 = inlined_call_operand.vmem [shape: bf16[32,64], index: 1, kind: input, shape index: {}]
  %s2 = inlined_call_operand.vmem [shape: f32[1,64], index: 2, kind: input, shape index: {}]
  %s3 = inlined_call_operand.vmem [shape: bf16[64,32], index: 3, kind: input, shape index: {}]
  %s4 = inlined_call_operand.vmem [shape: f32[1,32], index: 4, kind: input, shape index: {}]
  %s5 = inlined_call_operand.vmem [shape: f32[1,32], index: 5, kind: input, shape index: {}]
  %s6 = inlined_call_operand.vmem [shape: f32[1,32], index: 6, kind: input, shape index: {}]
  %s7 = inlined_call_operand.vmem [shape: bf16[16,32], index: 7, kind: output, shape index: {}]
  %s8 = sld [smem:[#allocation0]]
  $region38: #{intent_classifier_forward.8} parent=0
    _
  %s10 = ssub.s32 1, %s8
  %s11 = scalar_select 0, %s10, %s8
  // Predicated region
  $region2: #{intent_classifier_forward.8} parent=0 // pred_check
    _
  $region3: #{intent_classifier_forward.8} parent=0 // pred_check_branch
    %13 = sbr.rel (0) target = $region5
  $region4: #{intent_classifier_forward.8} parent=0 // pred_region
    _
  $region5: #{intent_classifier_forward.8} parent=0 // pred_fallthru
    _
  // Predicated region
  $region6: #{intent_classifier_forward.8} parent=0 // pred_check
    _
  $region7: #{intent_classifier_forward.8} parent=0 // pred_check_branch
    %15 = sbr.rel (0) target = $region9
  $region8: #{intent_classifier_forward.8} parent=0 // pred_region
    _
  $region9: #{intent_classifier_forward.8} parent=0 // pred_fallthru
    _
  // Predicated region
  $region10: #{intent_classifier_forward.8} parent=0 // pred_check
    _
  $region11: #{intent_classifier_forward.8} parent=0 // pred_check_branch
    %17 = sbr.rel (0) target = $region13
  $region12: #{intent_classifier_forward.8} parent=0 // pred_region
    _
  $region13: #{intent_classifier_forward.8} parent=0 // pred_fallthru
    _
  // Predicated region
  $region14: #{intent_classifier_forward.8} parent=0 // pred_check
    _
  $region15: #{intent_classifier_forward.8} parent=0 // pred_check_branch
    %19 = sbr.rel (0) target = $region17
  $region16: #{intent_classifier_forward.8} parent=0 // pred_region
    _
  $region17: #{intent_classifier_forward.8} parent=0 // pred_fallthru
    _
  // Predicated region
  $region18: #{intent_classifier_forward.8} parent=0 // pred_check
    _
  $region19: #{intent_classifier_forward.8} parent=0 // pred_check_branch
    %21 = sbr.rel (0) target = $region21
  $region20: #{intent_classifier_forward.8} parent=0 // pred_region
    _
  $region21: #{intent_classifier_forward.8} parent=0 // pred_fallthru
    _
  // Predicated region
  $region22: #{intent_classifier_forward.8} parent=0 // pred_check
    _
  $region23: #{intent_classifier_forward.8} parent=0 // pred_check_branch
    %23 = sbr.rel (0) target = $region25
  $region24: #{intent_classifier_forward.8} parent=0 // pred_region
    _
  $region25: #{intent_classifier_forward.8} parent=0 // pred_fallthru
    _
  // Predicated region
  $region26: #{intent_classifier_forward.8} parent=0 // pred_check
    _
  $region27: #{intent_classifier_forward.8} parent=0 // pred_check_branch
    %25 = sbr.rel (0) target = $region29
  $region28: #{intent_classifier_forward.8} parent=0 // pred_region
    _
  $region29: #{intent_classifier_forward.8} parent=0 // pred_fallthru
    _
  %v27 = vld [vmem:[%s0] sm:$0xf]
  %v28 = vld [vmem:[%s0 + $0x4] sm:$0xf]
  %v29 = vld [vmem:[%s1] sm:$0xf]
  %v30 = vld [vmem:[%s1 + $0x4] sm:$0xf]
  %v31 = vld [vmem:[%s1 + $0x8] sm:$0xf]
  %v32 = vld [vmem:[%s1 + $0xc] sm:$0xf]
  %v33 = vld [vmem:[%s2] sm:$0x1]
  %v35 = vlaneseq
  %v36 = vshrl.u32 %v35, 7
  %v37 = vsub.s32 0, %v36
  %v38 = vrot.slane %v33, %v37
  %v42 = vunpack.c.l.b16 %v27
  %v43 = vunpack.c.l.b16 %v28
  %v44 = vpack.c.b16 %v43, %v42
  %v49 = vunpack.c.l.b16 %v29
  %v50 = vunpack.c.l.b16 %v30
  %v51 = vunpack.c.l.b16 %v31
  %v52 = vunpack.c.l.b16 %v32
  %v53 = vpack.c.b16 %v50, %v49
  %v54 = vpack.c.b16 %v52, %v51
  %vm57 = vcmask 261120
  %v59 = vsel %vm57, %v44, 0
  %61 = vmatprep.subr.bf16.mxu0 0
  %62 = vmatpush1.bf16.msra.mxu0 0
  %63 = vmatprep.subr.bf16.mxu0 0
  %64 = vmatpush1.bf16.msra.mxu0 0
  %65 = vmatprep.subr.bf16.mxu0 0
  %66 = vmatpush1.bf16.msra.mxu0 0
  %67 = vmatprep.subr.bf16.mxu0 0
  %68 = vmatpush1.bf16.msra.mxu0 0
  %69 = vmatprep.subr.bf16.mxu0 0
  %70 = vmatpush1.bf16.msra.mxu0 0
  %71 = vmatprep.subr.bf16.mxu0 0
  %72 = vmatpush1.bf16.msra.mxu0 0
  %73 = vmatprep.subr.bf16.mxu0 0
  %74 = vmatpush1.bf16.msra.mxu0 %v54
  %75 = vmatprep.subr.bf16.mxu0 0
  %76 = vmatpush1.bf16.msra.mxu0 %v53
  %77 = vmatprep.subr.bf16.mxu0 0
  %78 = vmatpush2.bf16.msra.mxu0 0
  %79 = vmatprep.subr.bf16.mxu0 0
  %80 = vmatpush2.bf16.msra.mxu0 0
  %81 = vmatprep.subr.bf16.mxu0 0
  %82 = vmatpush2.bf16.msra.mxu0 0
  %83 = vmatprep.subr.bf16.mxu0 0
  %84 = vmatpush2.bf16.msra.mxu0 0
  %85 = vmatprep.subr.bf16.mxu0 0
  %86 = vmatpush2.bf16.msra.mxu0 0
  %87 = vmatprep.subr.bf16.mxu0 0
  %88 = vmatpush2.bf16.msra.mxu0 0
  %89 = vmatprep.subr.bf16.mxu0 0
  %90 = vmatpush2.bf16.msra.mxu0 0
  %91 = vmatprep.subr.bf16.mxu0 0
  %92 = vmatpush2.bf16.msra.mxu0 0
  %93 = vmatprep.mubr.bf16.mxu0 0
  %94 = vmatmul.mubr.bf16.gmra.mxu0 %v59
  %v95 = vpop.f32.mrf.mxu0
  %v96 = vadd.f32 %v38, %v95
  %v97 = vpop.f32.mrf.mxu0
  %v98 = vpop.f32.mrf.mxu0
  %v99 = vadd.f32 %v38, %v98
  %v100 = vpop.f32.mrf.mxu0
  %101 = vdwg.mxu0
  %v102 = vmul.f32 %v96, %v96
  %v103 = vmul.f32 %v99, %v99
  %v104 = vmul.f32 %v96, %v102
  %v105 = vmul.f32 %v99, %v103
  %v106 = vmul.f32 %v104, 0.044715
  %v107 = vmul.f32 %v105, 0.044715
  %v108 = vadd.f32 %v96, %v106
  %v109 = vadd.f32 %v99, %v107
  %v110 = vmul.f32 %v108, 0.7978846
  %v111 = vmul.f32 %v109, 0.7978846
  %v112 = vtanh.pop %v110
  %v113 = vtanh.pop %v111
  %v114 = vadd.f32 %v112, 1.0
  %v115 = vadd.f32 %v113, 1.0
  %v116 = vmul.f32 %v114, 0.5
  %v117 = vmul.f32 %v115, 0.5
  %v118 = vmul.f32 %v96, %v116
  %v119 = vmul.f32 %v99, %v117
  %v120 = vpack.c.bf16 %v119, %v118
  %v121 = vld [vmem:[%s3] sm:$0xf]
  %v122 = vld [vmem:[%s3 + $0x4] sm:$0xf]
  %v123 = vld [vmem:[%s3 + $0x8] sm:$0xf]
  %v124 = vld [vmem:[%s3 + $0xc] sm:$0xf]
  %v125 = vld [vmem:[%s3 + $0x10] sm:$0xf]
  %v126 = vld [vmem:[%s3 + $0x14] sm:$0xf]
  %v127 = vld [vmem:[%s3 + $0x18] sm:$0xf]
  %v128 = vld [vmem:[%s3 + $0x1c] sm:$0xf]
  %v129 = vld [vmem:[%s4] sm:$0x1]
  %v131 = vlaneseq
  %v132 = vshrl.u32 %v131, 7
  %v133 = vsub.s32 0, %v132
  %v134 = vrot.slane %v129, %v133
  %v144 = vunpack.c.l.b16 %v121
  %v145 = vunpack.c.l.b16 %v122
  %v146 = vunpack.c.l.b16 %v123
  %v147 = vunpack.c.l.b16 %v124
  %v148 = vunpack.c.l.b16 %v125
  %v149 = vunpack.c.l.b16 %v126
  %v150 = vunpack.c.l.b16 %v127
  %v151 = vunpack.c.l.b16 %v128
  %v152 = vpack.c.b16 %v145, %v144
  %v153 = vpack.c.b16 %v147, %v146
  %v154 = vpack.c.b16 %v149, %v148
  %v155 = vpack.c.b16 %v151, %v150
  %vm160 = vcmask 523264
  %v162 = vsel %vm160, %v120, 0
  %164 = vmatprep.subr.bf16.mxu0 0
  %165 = vmatpush1.bf16.msra.mxu0 0
  %166 = vmatprep.subr.bf16.mxu0 0
  %167 = vmatpush1.bf16.msra.mxu0 0
  %168 = vmatprep.subr.bf16.mxu0 0
  %169 = vmatpush1.bf16.msra.mxu0 0
  %170 = vmatprep.subr.bf16.mxu0 0
  %171 = vmatpush1.bf16.msra.mxu0 0
  %172 = vmatprep.subr.bf16.mxu0 0
  %173 = vmatpush1.bf16.msra.mxu0 %v155
  %174 = vmatprep.subr.bf16.mxu0 0
  %175 = vmatpush1.bf16.msra.mxu0 %v154
  %176 = vmatprep.subr.bf16.mxu0 0
  %177 = vmatpush1.bf16.msra.mxu0 %v153
  %178 = vmatprep.subr.bf16.mxu0 0
  %179 = vmatpush1.bf16.msra.mxu0 %v152
  %180 = vmatprep.subr.bf16.mxu0 0
  %181 = vmatpush2.bf16.msra.mxu0 0
  %182 = vmatprep.subr.bf16.mxu0 0
  %183 = vmatpush2.bf16.msra.mxu0 0
  %184 = vmatprep.subr.bf16.mxu0 0
  %185 = vmatpush2.bf16.msra.mxu0 0
  %186 = vmatprep.subr.bf16.mxu0 0
  %187 = vmatpush2.bf16.msra.mxu0 0
  %188 = vmatprep.subr.bf16.mxu0 0
  %189 = vmatpush2.bf16.msra.mxu0 0
  %190 = vmatprep.subr.bf16.mxu0 0
  %191 = vmatpush2.bf16.msra.mxu0 0
  %192 = vmatprep.subr.bf16.mxu0 0
  %193 = vmatpush2.bf16.msra.mxu0 0
  %194 = vmatprep.subr.bf16.mxu0 0
  %195 = vmatpush2.bf16.msra.mxu0 0
  %196 = vmatprep.mubr.bf16.mxu0 0
  %197 = vmatmul.mubr.bf16.gmra.mxu0 %v162
  %v198 = vpop.f32.mrf.mxu0
  %v199 = vadd.f32 %v134, %v198
  %v200 = vpop.f32.mrf.mxu0
  %v201 = vpop.f32.mrf.mxu0
  %v202 = vadd.f32 %v134, %v201
  %v203 = vpop.f32.mrf.mxu0
  %204 = vdwg.mxu0
  %v205 = vunpack.c.l.bf16 %v27
  %v206 = vunpack.c.l.bf16 %v28
  %v207 = vadd.f32 %v199, %v205
  %v208 = vadd.f32 %v202, %v206
  %v209 = vsel %vm57, %v207, 0.0
  %210 = vadd.xlane.f32.xlu0 %v209
  %v211 = vpop.xlane.xlu0 %210
  %v212 = vsel %vm57, %v208, 0.0
  %213 = vadd.xlane.f32.xlu0 %v212
  %v214 = vpop.xlane.xlu0 %213
  %v215 = vrcp.pop 32.0
  %v216 = vmul.f32 %v211, %v215
  %v217 = vmul.f32 %v214, %v215
  %v218 = vsub.f32 %v207, %v216
  %v219 = vsub.f32 %v208, %v217
  %v220 = vmul.f32 %v218, %v218
  %v221 = vmul.f32 %v219, %v219
  %v222 = vsel %vm57, %v220, 0.0
  %223 = vadd.xlane.f32.xlu0 %v222
  %v224 = vpop.xlane.xlu0 %223
  %v225 = vsel %vm57, %v221, 0.0
  %226 = vadd.xlane.f32.xlu0 %v225
  %v227 = vpop.xlane.xlu0 %226
  %v228 = vmul.f32 %v224, %v215
  %v229 = vmul.f32 %v227, %v215
  %v230 = vadd.f32 %v228, 1e-12
  %v231 = vadd.f32 %v229, 1e-12
  %v232 = vrsqrt.pop %v230
  %v233 = vrsqrt.pop %v231
  %v234 = vmul.f32 %v218, %v232
  %v235 = vmul.f32 %v219, %v233
  %v236 = vld [vmem:[%s5] sm:$0x1]
  %v238 = vlaneseq
  %v239 = vshrl.u32 %v238, 7
  %v240 = vsub.s32 0, %v239
  %v241 = vrot.slane %v236, %v240
  %v243 = vmul.f32 %v234, %v241
  %v244 = vmul.f32 %v235, %v241
  %v245 = vld [vmem:[%s6] sm:$0x1]
  %v247 = vlaneseq
  %v248 = vshrl.u32 %v247, 7
  %v249 = vsub.s32 0, %v248
  %v250 = vrot.slane %v245, %v249
  %v252 = vadd.f32 %v243, %v250
  %v253 = vadd.f32 %v244, %v250
  %v254 = vpack.c.bf16 %v253, %v252
  %v256 = vunpack.c.l.b16 %v254
  %v257 = vunpack.c.h.b16 %v254
  %v258 = vpack.c.b16 %v256, %v256
  %v259 = vpack.c.b16 %v257, %v257
  %vm262 = vcmask 257024
  %263 = vst.msk [vmem:[%s7] sm:$0xf] %vm262, %v258
  %264 = vst.msk [vmem:[%s7 + $0x4] sm:$0xf] %vm262, %v259
  // Predicated region
  $region30: #{intent_classifier_forward.8} parent=0 // pred_check
    _
  $region31: #{intent_classifier_forward.8} parent=0 // pred_check_branch
    %266 = sbr.rel (0) target = $region33
  $region32: #{intent_classifier_forward.8} parent=0 // pred_region
    _
  $region33: #{intent_classifier_forward.8} parent=0 // pred_fallthru
    _
  // Predicated region
  $region34: #{intent_classifier_forward.8} parent=0 // pred_check
    _
  $region35: #{intent_classifier_forward.8} parent=0 // pred_check_branch
    %268 = sbr.rel (0) target = $region37
  $region36: #{intent_classifier_forward.8} parent=0 // pred_region
    _
  $region37: #{intent_classifier_forward.8} parent=0 // pred_fallthru
    _

// kernel: intent_classifier_forward.7
$region0: #{intent_classifier_forward.7}
  #allocation0 [shape = 'u32[]', space=smem, size = 0x4, offset = 0x4, fixed_abs, tag = 'smem constant byte address 0x4 - core index']
  #allocation1 [shape = 'u32[144,128]{1,0:T(1,128)}', space=vmem, size = 0x12000, scoped, tag = 'internal scratch']
  %s0 = inlined_call_operand.vmem [shape: bf16[2,8,32], index: 0, kind: input, shape index: {}]
  %s1 = inlined_call_operand.vmem [shape: f32[2,1,8], index: 1, kind: input, shape index: {}]
  %s2 = inlined_call_operand.vmem [shape: bf16[32,96], index: 2, kind: input, shape index: {}]
  %s3 = inlined_call_operand.vmem [shape: f32[1,96], index: 3, kind: input, shape index: {}]
  %s4 = inlined_call_operand.vmem [shape: bf16[32,32], index: 4, kind: input, shape index: {}]
  %s5 = inlined_call_operand.vmem [shape: f32[1,32], index: 5, kind: input, shape index: {}]
  %s6 = inlined_call_operand.vmem [shape: f32[1,32], index: 6, kind: input, shape index: {}]
  %s7 = inlined_call_operand.vmem [shape: f32[1,32], index: 7, kind: input, shape index: {}]
  %s8 = inlined_call_operand.vmem [shape: bf16[2,8,32], index: 8, kind: output, shape index: {}]
  %s9 = sld [smem:[#allocation0]]
  $region65: #{intent_classifier_forward.7} parent=0
    _
  %s11 = ssub.s32 1, %s9
  %s12 = scalar_select 0, %s11, %s9
  loop: start=0, step=1, limit=4
  $region2: #{intent_classifier_forward.7} parent=0 // loop_pre_header
    _
  $region3: #{intent_classifier_forward.7} parent=0 // loop_header
    %s14 = sphi 0, %s18
    %p15 = scmp.ge.s32.totalorder %s14, 4
    %s24 = sphi 0, %s26
    %s27 = sphi 0, %s24
    %s28 = sphi 0, %s27
    %s44 = sphi 0, %s28
    %s50 = sphi 0, %s52
    %s53 = sphi 0, %s50
    %s54 = sphi 0, %s53
    %s70 = sphi 0, %s54
    %s74 = sphi 0, %s74
    %s76 = sphi 0, %s74
    %s77 = sphi 0, %s76
    %s91 = sphi 0, %s77
    %s95 = sphi 0, %s95
    %s97 = sphi 0, %s95
    %s98 = sphi 0, %s97
    %s112 = sphi 0, %s98
    %s116 = sphi 0, %s116
    %s118 = sphi 0, %s116
    %s119 = sphi 0, %s118
    %s133 = sphi 0, %s119
    %s137 = sphi 0, %s137
    %s139 = sphi 0, %s137
    %s140 = sphi 0, %s139
    %s154 = sphi 0, %s140
    %s158 = sphi 0, %s158
    %s160 = sphi 0, %s158
    %s161 = sphi 0, %s160
    %s175 = sphi 0, %s161
    %s179 = sphi 0, %s179
    %s181 = sphi 0, %s179
    %s182 = sphi 0, %s181
    %s196 = sphi 0, %s182
    %s202 = sphi 0, %s204
    %s205 = sphi 0, %s202
    %s206 = sphi 0, %s205
    %s222 = sphi 0, %s206
  $region4: #{intent_classifier_forward.7} parent=0 // loop_header_branch
    %17 = sbr.rel (%p15) target = $region8
  $region5: #{intent_classifier_forward.7} parent=0 // loop_body
    %s19 = ssub.s32 %s14, 1
    %s20 = ssub.s32 %s14, 2
    %s21 = sadd.s32 %s14, 1
    %s22 = ssub.s32 %s14, %s21
    %p23 = scmp.eq.s32.totalorder %s22, 0
    %s25 = sadd.s32 %s24, 1
    %s26 = scalar_select %p23, %s24, %s25
    %p29 = pneg %p23
    %p30 = scmp.eq.s32.totalorder %s14, 1
    %p31 = por %p29, %p30
    %p32 = scmp.ne.s32.totalorder %s24, %s27
    %p33 = scmp.eq.s32.totalorder %s14, 0
    %p34 = por %p32, %p33
    %p35 = scmp.ne.s32.totalorder %s24, %s27
    %p36 = scmp.eq.s32.totalorder %s19, 1
    %p37 = por %p35, %p36
    %p38 = scmp.ne.s32.totalorder %s27, %s28
    %p39 = scmp.eq.s32.totalorder %s19, 0
    %p40 = por %p38, %p39
    %p41 = scmp.ne.s32.totalorder %s27, %s28
    %p42 = scmp.eq.s32.totalorder %s20, 1
    %p43 = por %p41, %p42
    %p45 = scmp.ne.s32.totalorder %s28, %s44
    %p46 = scmp.eq.s32.totalorder %s20, 0
    %p47 = por %p45, %p46
    %s48 = ssub.s32 %s14, %s21
    %p49 = scmp.eq.s32.totalorder %s48, 0
    %s51 = sadd.s32 %s50, 1
    %s52 = scalar_select %p49, %s50, %s51
    %p55 = pneg %p49
    %p56 = scmp.eq.s32.totalorder %s14, 1
    %p57 = por %p55, %p56
    %p58 = scmp.ne.s32.totalorder %s50, %s53
    %p59 = scmp.eq.s32.totalorder %s14, 0
    %p60 = por %p58, %p59
    %p61 = scmp.ne.s32.totalorder %s50, %s53
    %p62 = scmp.eq.s32.totalorder %s19, 1
    %p63 = por %p61, %p62
    %p64 = scmp.ne.s32.totalorder %s53, %s54
    %p65 = scmp.eq.s32.totalorder %s19, 0
    %p66 = por %p64, %p65
    %p67 = scmp.ne.s32.totalorder %s53, %s54
    %p68 = scmp.eq.s32.totalorder %s20, 1
    %p69 = por %p67, %p68
    %p71 = scmp.ne.s32.totalorder %s54, %s70
    %p72 = scmp.eq.s32.totalorder %s20, 0
    %p73 = por %p71, %p72
    %s75 = sadd.s32 %s74, 1
    %p78 = scmp.eq.s32.totalorder %s14, 1
    %p79 = scmp.ne.s32.totalorder %s74, %s76
    %p80 = scmp.eq.s32.totalorder %s14, 0
    %p81 = por %p79, %p80
    %p82 = scmp.ne.s32.totalorder %s74, %s76
    %p83 = scmp.eq.s32.totalorder %s19, 1
    %p84 = por %p82, %p83
    %p85 = scmp.ne.s32.totalorder %s76, %s77
    %p86 = scmp.eq.s32.totalorder %s19, 0
    %p87 = por %p85, %p86
    %p88 = scmp.ne.s32.totalorder %s76, %s77
    %p89 = scmp.eq.s32.totalorder %s20, 1
    %p90 = por %p88, %p89
    %p92 = scmp.ne.s32.totalorder %s77, %s91
    %p93 = scmp.eq.s32.totalorder %s20, 0
    %p94 = por %p92, %p93
    %s96 = sadd.s32 %s95, 1
    %p99 = scmp.eq.s32.totalorder %s14, 1
    %p100 = scmp.ne.s32.totalorder %s95, %s97
    %p101 = scmp.eq.s32.totalorder %s14, 0
    %p102 = por %p100, %p101
    %p103 = scmp.ne.s32.totalorder %s95, %s97
    %p104 = scmp.eq.s32.totalorder %s19, 1
    %p105 = por %p103, %p104
    %p106 = scmp.ne.s32.totalorder %s97, %s98
    %p107 = scmp.eq.s32.totalorder %s19, 0
    %p108 = por %p106, %p107
    %p109 = scmp.ne.s32.totalorder %s97, %s98
    %p110 = scmp.eq.s32.totalorder %s20, 1
    %p111 = por %p109, %p110
    %p113 = scmp.ne.s32.totalorder %s98, %s112
    %p114 = scmp.eq.s32.totalorder %s20, 0
    %p115 = por %p113, %p114
    %s117 = sadd.s32 %s116, 1
    %p120 = scmp.eq.s32.totalorder %s14, 1
    %p121 = scmp.ne.s32.totalorder %s116, %s118
    %p122 = scmp.eq.s32.totalorder %s14, 0
    %p123 = por %p121, %p122
    %p124 = scmp.ne.s32.totalorder %s116, %s118
    %p125 = scmp.eq.s32.totalorder %s19, 1
    %p126 = por %p124, %p125
    %p127 = scmp.ne.s32.totalorder %s118, %s119
    %p128 = scmp.eq.s32.totalorder %s19, 0
    %p129 = por %p127, %p128
    %p130 = scmp.ne.s32.totalorder %s118, %s119
    %p131 = scmp.eq.s32.totalorder %s20, 1
    %p132 = por %p130, %p131
    %p134 = scmp.ne.s32.totalorder %s119, %s133
    %p135 = scmp.eq.s32.totalorder %s20, 0
    %p136 = por %p134, %p135
    %s138 = sadd.s32 %s137, 1
    %p141 = scmp.eq.s32.totalorder %s14, 1
    %p142 = scmp.ne.s32.totalorder %s137, %s139
    %p143 = scmp.eq.s32.totalorder %s14, 0
    %p144 = por %p142, %p143
    %p145 = scmp.ne.s32.totalorder %s137, %s139
    %p146 = scmp.eq.s32.totalorder %s19, 1
    %p147 = por %p145, %p146
    %p148 = scmp.ne.s32.totalorder %s139, %s140
    %p149 = scmp.eq.s32.totalorder %s19, 0
    %p150 = por %p148, %p149
    %p151 = scmp.ne.s32.totalorder %s139, %s140
    %p152 = scmp.eq.s32.totalorder %s20, 1
    %p153 = por %p151, %p152
    %p155 = scmp.ne.s32.totalorder %s140, %s154
    %p156 = scmp.eq.s32.totalorder %s20, 0
    %p157 = por %p155, %p156
    %s159 = sadd.s32 %s158, 1
    %p162 = scmp.eq.s32.totalorder %s14, 1
    %p163 = scmp.ne.s32.totalorder %s158, %s160
    %p164 = scmp.eq.s32.totalorder %s14, 0
    %p165 = por %p163, %p164
    %p166 = scmp.ne.s32.totalorder %s158, %s160
    %p167 = scmp.eq.s32.totalorder %s19, 1
    %p168 = por %p166, %p167
    %p169 = scmp.ne.s32.totalorder %s160, %s161
    %p170 = scmp.eq.s32.totalorder %s19, 0
    %p171 = por %p169, %p170
    %p172 = scmp.ne.s32.totalorder %s160, %s161
    %p173 = scmp.eq.s32.totalorder %s20, 1
    %p174 = por %p172, %p173
    %p176 = scmp.ne.s32.totalorder %s161, %s175
    %p177 = scmp.eq.s32.totalorder %s20, 0
    %p178 = por %p176, %p177
    %s180 = sadd.s32 %s179, 1
    %p183 = scmp.eq.s32.totalorder %s14, 1
    %p184 = scmp.ne.s32.totalorder %s179, %s181
    %p185 = scmp.eq.s32.totalorder %s14, 0
    %p186 = por %p184, %p185
    %p187 = scmp.ne.s32.totalorder %s179, %s181
    %p188 = scmp.eq.s32.totalorder %s19, 1
    %p189 = por %p187, %p188
    %p190 = scmp.ne.s32.totalorder %s181, %s182
    %p191 = scmp.eq.s32.totalorder %s19, 0
    %p192 = por %p190, %p191
    %p193 = scmp.ne.s32.totalorder %s181, %s182
    %p194 = scmp.eq.s32.totalorder %s20, 1
    %p195 = por %p193, %p194
    %p197 = scmp.ne.s32.totalorder %s182, %s196
    %p198 = scmp.eq.s32.totalorder %s20, 0
    %p199 = por %p197, %p198
    %s200 = ssub.s32 %s14, %s21
    %p201 = scmp.eq.s32.totalorder %s200, 0
    %s203 = sadd.s32 %s202, 1
    %s204 = scalar_select %p201, %s202, %s203
    %p207 = pneg %p201
    %p208 = scmp.eq.s32.totalorder %s14, 1
    %p209 = por %p207, %p208
    %p210 = scmp.ne.s32.totalorder %s202, %s205
    %p211 = scmp.eq.s32.totalorder %s14, 0
    %p212 = por %p210, %p211
    %p213 = scmp.ne.s32.totalorder %s202, %s205
    %p214 = scmp.eq.s32.totalorder %s19, 1
    %p215 = por %p213, %p214
    %p216 = scmp.ne.s32.totalorder %s205, %s206
    %p217 = scmp.eq.s32.totalorder %s19, 0
    %p218 = por %p216, %p217
    %p219 = scmp.ne.s32.totalorder %s205, %s206
    %p220 = scmp.eq.s32.totalorder %s20, 1
    %p221 = por %p219, %p220
    %p223 = scmp.ne.s32.totalorder %s206, %s222
    %p224 = scmp.eq.s32.totalorder %s20, 0
    %p225 = por %p223, %p224
    %p226 = scmp.le.s32.totalorder 1, %s14
    %p227 = scmp.lt.s32.totalorder %s14, 3
    %p228 = pnand %p226, %p227
    %p229 = pneg %p228
    // Predicated region
    $region9: #{intent_classifier_forward.7} parent=5 // pred_check
      _
    $region10: #{intent_classifier_forward.7} parent=5 // pred_check_branch
      %231 = sbr.rel (%p228) target = $region12
    $region11: #{intent_classifier_forward.7} parent=5 // pred_region
      %s232 = ssub.s32 %s14, 1
      // Predicated region
      $region13: #{intent_classifier_forward.7} parent=11 // pred_check
        %p233 = pneg %p87
      $region14: #{intent_classifier_forward.7} parent=11 // pred_check_branch
        %235 = sbr.rel (%p233) target = $region16
      $region15: #{intent_classifier_forward.7} parent=11 // pred_region
        _
      $region16: #{intent_classifier_forward.7} parent=11 // pred_fallthru
        _
      // Predicated region
      $region17: #{intent_classifier_forward.7} parent=11 // pred_check
        %p236 = pneg %p108
      $region18: #{intent_classifier_forward.7} parent=11 // pred_check_branch
        %238 = sbr.rel (%p236) target = $region20
      $region19: #{intent_classifier_forward.7} parent=11 // pred_region
        _
      $region20: #{intent_classifier_forward.7} parent=11 // pred_fallthru
        _
      // Predicated region
      $region21: #{intent_classifier_forward.7} parent=11 // pred_check
        %p239 = pneg %p129
      $region22: #{intent_classifier_forward.7} parent=11 // pred_check_branch
        %241 = sbr.rel (%p239) target = $region24
      $region23: #{intent_classifier_forward.7} parent=11 // pred_region
        _
      $region24: #{intent_classifier_forward.7} parent=11 // pred_fallthru
        _
      // Predicated region
      $region25: #{intent_classifier_forward.7} parent=11 // pred_check
        %p242 = pneg %p150
      $region26: #{intent_classifier_forward.7} parent=11 // pred_check_branch
        %244 = sbr.rel (%p242) target = $region28
      $region27: #{intent_classifier_forward.7} parent=11 // pred_region
        _
      $region28: #{intent_classifier_forward.7} parent=11 // pred_fallthru
        _
      // Predicated region
      $region29: #{intent_classifier_forward.7} parent=11 // pred_check
        %p245 = pneg %p171
      $region30: #{intent_classifier_forward.7} parent=11 // pred_check_branch
        %247 = sbr.rel (%p245) target = $region32
      $region31: #{intent_classifier_forward.7} parent=11 // pred_region
        _
      $region32: #{intent_classifier_forward.7} parent=11 // pred_fallthru
        _
      // Predicated region
      $region33: #{intent_classifier_forward.7} parent=11 // pred_check
        %p248 = pneg %p192
      $region34: #{intent_classifier_forward.7} parent=11 // pred_check_branch
        %250 = sbr.rel (%p248) target = $region36
      $region35: #{intent_classifier_forward.7} parent=11 // pred_region
        _
      $region36: #{intent_classifier_forward.7} parent=11 // pred_fallthru
        _
    $region12: #{intent_classifier_forward.7} parent=5 // pred_fallthru
      _
    %p251 = scmp.lt.s32.totalorder %s14, 2
    // Predicated region
    $region37: #{intent_classifier_forward.7} parent=5 // pred_check
      %p252 = pneg %p251
    $region38: #{intent_classifier_forward.7} parent=5 // pred_check_branch
      %254 = sbr.rel (%p252) target = $region40
    $region39: #{intent_classifier_forward.7} parent=5 // pred_region
      // Predicated region
      $region41: #{intent_classifier_forward.7} parent=39 // pred_check
        %p255 = pneg %p34
      $region42: #{intent_classifier_forward.7} parent=39 // pred_check_branch
        %257 = sbr.rel (%p255) target = $region44
      $region43: #{intent_classifier_forward.7} parent=39 // pred_region
        %p258 = scmp.lt.s32.totalorder %s14, 1
        %s259 = scalar_select %p258, %s14, 1
        %s260 = smul.addr %s259, 4
        %s261 = scalar_lea.vmem %s0, %s260
      $region44: #{intent_classifier_forward.7} parent=39 // pred_fallthru
        _
      // Predicated region
      $region45: #{intent_classifier_forward.7} parent=39 // pred_check
        %p262 = pneg %p60
      $region46: #{intent_classifier_forward.7} parent=39 // pred_check_branch
        %264 = sbr.rel (%p262) target = $region48
      $region47: #{intent_classifier_forward.7} parent=39 // pred_region
        %p265 = scmp.lt.s32.totalorder %s14, 1
        %s266 = scalar_select %p265, %s14, 1
        %s267 = scalar_lea.vmem %s1, %s266
      $region48: #{intent_classifier_forward.7} parent=39 // pred_fallthru
        _
    $region40: #{intent_classifier_forward.7} parent=5 // pred_fallthru
      _
    %p268 = scmp.le.s32.totalorder 1, %s14
    %p269 = scmp.lt.s32.totalorder %s14, 3
    %p270 = pnand %p268, %p269
    %p271 = pneg %p270
    // Predicated region
    $region49: #{intent_classifier_forward.7} parent=5 // pred_check
      _
    $region50: #{intent_classifier_forward.7} parent=5 // pred_check_branch
      %273 = sbr.rel (%p270) target = $region52
    $region51: #{intent_classifier_forward.7} parent=5 // pred_region
      %s274 = ssub.s32 %s14, 1
      %p275 = scmp.lt.s32.totalorder %s19, 1
      %s276 = scalar_select %p275, %s19, 1
      %s277 = smul.addr %s276, 4
      %s278 = scalar_lea.vmem %s0, %s277
      %p279 = pneg %p40
      %p280 = pneg %p37
      %p281 = scmp.lt.s32.totalorder %s19, 1
      %s282 = scalar_select %p281, %s19, 1
      %s283 = scalar_lea.vmem %s1, %s282
      %p284 = pneg %p66
      %p285 = pneg %p63
      %p286 = pneg %p87
      %p287 = pneg %p84
      %p288 = pneg %p108
      %p289 = pneg %p105
      %p290 = pneg %p129
      %p291 = pneg %p126
      %p292 = pneg %p150
      %p293 = pneg %p147
      %p294 = pneg %p171
      %p295 = pneg %p168
      %p296 = pneg %p192
      %p297 = pneg %p189
      %p298 = pneg %p218
      %p299 = pneg %p215
      %p300 = scmp.lt.s32.totalorder %s19, 1
      %s301 = scalar_select %p300, %s19, 1
      %s302 = smul.addr %s301, 4
      %s303 = scalar_lea.vmem %s8, %s302
      %p304 = scmp.lt.s32.totalorder %s19, 1
      %s305 = scalar_select %p304, %s19, 1
      %s306 = smul.addr %s305, 4
      %s307 = scalar_lea.vmem %s0, %s306
      %p308 = scmp.lt.s32.totalorder %s19, 1
      %s309 = scalar_select %p308, %s19, 1
      %s310 = scalar_lea.vmem %s1, %s309
      %p311 = scmp.lt.s32.totalorder %s19, 1
      %s312 = scalar_select %p311, %s19, 1
      %s313 = smul.addr %s312, 4
      %s314 = scalar_lea.vmem %s8, %s313
      %v316 = vld [vmem:[%s307] sm:$0xf]
      %v317 = vld [vmem:[%s310] sm:$0x1]
      %v318 = vld [vmem:[%s2] sm:$0xf]
      %v319 = vld [vmem:[%s2 + $0x4] sm:$0xf]
      %v320 = vld [vmem:[%s2 + $0x8] sm:$0xf]
      %v321 = vld [vmem:[%s2 + $0xc] sm:$0xf]
      %v322 = vld [vmem:[%s3] sm:$0x1]
      %v324 = vlaneseq
      %v325 = vshrl.u32 %v324, 7
      %v326 = vsub.s32 0, %v325
      %v327 = vrot.slane %v322, %v326
      %v333 = vunpack.c.l.b16 %v318
      %v334 = vunpack.c.l.b16 %v319
      %v335 = vunpack.c.l.b16 %v320
      %v336 = vunpack.c.l.b16 %v321
      %v337 = vpack.c.b16 %v334, %v333
      %v338 = vpack.c.b16 %v336, %v335
      %vm341 = vcmask 261120
      %v343 = vsel %vm341, %v316, 0
      %345 = vmatprep.subr.bf16.mxu0 0
      %346 = vmatpush1.bf16.msra.mxu0 0
      %347 = vmatprep.subr.bf16.mxu0 0
      %348 = vmatpush1.bf16.msra.mxu0 0
      %349 = vmatprep.subr.bf16.mxu0 0
      %350 = vmatpush1.bf16.msra.mxu0 0
      %351 = vmatprep.subr.bf16.mxu0 0
      %352 = vmatpush1.bf16.msra.mxu0 0
      %353 = vmatprep.subr.bf16.mxu0 0
      %354 = vmatpush1.bf16.msra.mxu0 0
      %355 = vmatprep.subr.bf16.mxu0 0
      %356 = vmatpush1.bf16.msra.mxu0 0
      %357 = vmatprep.subr.bf16.mxu0 0
      %358 = vmatpush1.bf16.msra.mxu0 %v338
      %359 = vmatprep.subr.bf16.mxu0 0
      %360 = vmatpush1.bf16.msra.mxu0 %v337
      %361 = vmatprep.subr.bf16.mxu0 0
      %362 = vmatpush2.bf16.msra.mxu0 0
      %363 = vmatprep.subr.bf16.mxu0 0
      %364 = vmatpush2.bf16.msra.mxu0 0
      %365 = vmatprep.subr.bf16.mxu0 0
      %366 = vmatpush2.bf16.msra.mxu0 0
      %367 = vmatprep.subr.bf16.mxu0 0
      %368 = vmatpush2.bf16.msra.mxu0 0
      %369 = vmatprep.subr.bf16.mxu0 0
      %370 = vmatpush2.bf16.msra.mxu0 0
      %371 = vmatprep.subr.bf16.mxu0 0
      %372 = vmatpush2.bf16.msra.mxu0 0
      %373 = vmatprep.subr.bf16.mxu0 0
      %374 = vmatpush2.bf16.msra.mxu0 0
      %375 = vmatprep.subr.bf16.mxu0 0
      %376 = vmatpush2.bf16.msra.mxu0 0
      %377 = vmatprep.mubr.bf16.mxu0 0
      %378 = vmatmul.mubr.bf16.gmra.mxu0 %v343
      %v379 = vpop.f32.mrf.mxu0
      %v380 = vadd.f32 %v327, %v379
      %v381 = vpop.f32.mrf.mxu0
      %v382 = vpop.f32.mrf.mxu0
      %v383 = vpop.f32.mrf.mxu0
      %384 = vdwg.mxu0
      %v385 = vpack.c.bf16 %v380, %v380
      %387 = vrot.lane.b32.xlu0 %v385, 96
      %v388 = vpop.permute.xlu0 %387
      %vm389 = vcmask 130048
      %v391 = vsel %vm389, %v385, 0
      %v394 = vsel %vm389, %v388, 0
      %396 = vmatprep.subr.bf16.mxu0 0
      %397 = vmatpush1.bf16.xpose.msra.mxu0 0
      %398 = vmatprep.subr.bf16.mxu0 0
      %399 = vmatpush1.bf16.xpose.msra.mxu0 0
      %400 = vmatprep.subr.bf16.mxu0 0
      %401 = vmatpush1.bf16.xpose.msra.mxu0 0
      %402 = vmatprep.subr.bf16.mxu0 0
      %403 = vmatpush1.bf16.xpose.msra.mxu0 0
      %404 = vmatprep.subr.bf16.mxu0 0
      %405 = vmatpush1.bf16.xpose.msra.mxu0 0
      %406 = vmatprep.subr.bf16.mxu0 0
      %407 = vmatpush1.bf16.xpose.msra.mxu0 0
      %408 = vmatprep.subr.bf16.mxu0 0
      %409 = vmatpush1.bf16.xpose.msra.mxu0 0
      %410 = vmatprep.subr.bf16.mxu0 0
      %411 = vmatpush1.bf16.xpose.msra.mxu0 %v394
      %412 = vmatprep.subr.bf16.mxu0 0
      %413 = vmatpush2.bf16.xpose.msra.mxu0 0
      %414 = vmatprep.subr.bf16.mxu0 0
      %415 = vmatpush2.bf16.xpose.msra.mxu0 0
      %416 = vmatprep.subr.bf16.mxu0 0
      %417 = vmatpush2.bf16.xpose.msra.mxu0 0
      %418 = vmatprep.subr.bf16.mxu0 0
      %419 = vmatpush2.bf16.xpose.msra.mxu0 0
      %420 = vmatprep.subr.bf16.mxu0 0
      %421 = vmatpush2.bf16.xpose.msra.mxu0 0
      %422 = vmatprep.subr.bf16.mxu0 0
      %423 = vmatpush2.bf16.xpose.msra.mxu0 0
      %424 = vmatprep.subr.bf16.mxu0 0
      %425 = vmatpush2.bf16.xpose.msra.mxu0 0
      %426 = vmatprep.subr.bf16.mxu0 0
      %427 = vmatpush2.bf16.xpose.msra.mxu0 0
      %428 = vmatprep.mubr.bf16.mxu0 0
      %429 = vmatmul.mubr.bf16.gmra.mxu0 %v391
      %v430 = vpop.f32.mrf.mxu0
      %v431 = vadd.f32 0.0, %v430
      %v432 = vpop.f32.mrf.mxu0
      %v433 = vpop.f32.mrf.mxu0
      %v434 = vpop.f32.mrf.mxu0
      %435 = vdwg.mxu0
      %v436 = vmul.f32 %v431, 0.25
      %vm437 = vcmp.gt.f32.partialorder %v317, 0.5
      %v438 = vsel %vm437, 1, 0
      %v439 = vlaneseq
      %v440 = vshrl.u32 %v439, 7
      %v441 = vsub.s32 0, %v440
      %v442 = vrot.slane %v438, %v441
      %vm443 = vcmp.eq.s32.totalorder %v442, 1
      %v444 = vsel %vm443, %v436, -3.4028235e+38
      %vm445 = vcmask 64512
      %v446 = vsel %vm445, %v444, -inf
      %447 = vmax.xlane.f32.xlu0 %v446
      %v448 = vpop.xlane.xlu0 %447
      %v449 = vsub.f32 %v444, %v448
      %v450 = vmul.f32 %v449, 1.442695
      %v451 = vpow.pop %v450
      %v452 = vsel %vm445, %v451, 0.0
      %453 = vadd.xlane.f32.xlu0 %v452
      %v454 = vpop.xlane.xlu0 %453
      %v455 = vrcp.pop %v454
      %v456 = vmul.f32 %v451, %v455
      %v457 = vpack.c.bf16 %v456, %v456
      %458 = vrot.lane.b32.xlu0 %v385, 64
      %v459 = vpop.permute.xlu0 %458
      %v461 = vsel %vm445, %v457, 0
      %vm463 = vcmask 1043456
      %v465 = vsel %vm463, %v459, 0
      %467 = vmatprep.subr.bf16.mxu0 0
      %468 = vmatpush1.bf16.msra.mxu0 0
      %469 = vmatprep.subr.bf16.mxu0 0
      %470 = vmatpush1.bf16.msra.mxu0 0
      %471 = vmatprep.subr.bf16.mxu0 0
      %472 = vmatpush1.bf16.msra.mxu0 0
      %473 = vmatprep.subr.bf16.mxu0 0
      %474 = vmatpush1.bf16.msra.mxu0 0
      %475 = vmatprep.subr.bf16.mxu0 0
      %476 = vmatpush1.bf16.msra.mxu0 0
      %477 = vmatprep.subr.bf16.mxu0 0
      %478 = vmatpush1.bf16.msra.mxu0 0
      %479 = vmatprep.subr.bf16.mxu0 0
      %480 = vmatpush1.bf16.msra.mxu0 0
      %481 = vmatprep.subr.bf16.mxu0 0
      %482 = vmatpush1.bf16.msra.mxu0 %v465
      %483 = vmatprep.subr.bf16.mxu0 0
      %484 = vmatpush2.bf16.msra.mxu0 0
      %485 = vmatprep.subr.bf16.mxu0 0
      %486 = vmatpush2.bf16.msra.mxu0 0
      %487 = vmatprep.subr.bf16.mxu0 0
      %488 = vmatpush2.bf16.msra.mxu0 0
      %489 = vmatprep.subr.bf16.mxu0 0
      %490 = vmatpush2.bf16.msra.mxu0 0
      %491 = vmatprep.subr.bf16.mxu0 0
      %492 = vmatpush2.bf16.msra.mxu0 0
      %493 = vmatprep.subr.bf16.mxu0 0
      %494 = vmatpush2.bf16.msra.mxu0 0
      %495 = vmatprep.subr.bf16.mxu0 0
      %496 = vmatpush2.bf16.msra.mxu0 0
      %497 = vmatprep.subr.bf16.mxu0 0
      %498 = vmatpush2.bf16.msra.mxu0 0
      %499 = vmatprep.mubr.bf16.mxu0 0
      %500 = vmatmul.mubr.bf16.gmra.mxu0 %v461
      %v501 = vpop.f32.mrf.mxu0
      %v502 = vadd.f32 0.0, %v501
      %v503 = vpop.f32.mrf.mxu0
      %v504 = vpop.f32.mrf.mxu0
      %v505 = vpop.f32.mrf.mxu0
      %506 = vdwg.mxu0
      %507 = vrot.lane.b32.xlu0 %v385, 112
      %v508 = vpop.permute.xlu0 %507
      %509 = vrot.lane.b32.xlu0 %v385, 80
      %v510 = vpop.permute.xlu0 %509
      %v512 = vsel %vm389, %v508, 0
      %v515 = vsel %vm389, %v510, 0
      %517 = vmatprep.subr.bf16.mxu0 0
      %518 = vmatpush1.bf16.xpose.msra.mxu0 0
      %519 = vmatprep.subr.bf16.mxu0 0
      %520 = vmatpush1.bf16.xpose.msra.mxu0 0
      %521 = vmatprep.subr.bf16.mxu0 0
      %522 = vmatpush1.bf16.xpose.msra.mxu0 0
      %523 = vmatprep.subr.bf16.mxu0 0
      %524 = vmatpush1.bf16.xpose.msra.mxu0 0
      %525 = vmatprep.subr.bf16.mxu0 0
      %526 = vmatpush1.bf16.xpose.msra.mxu0 0
      %527 = vmatprep.subr.bf16.mxu0 0
      %528 = vmatpush1.bf16.xpose.msra.mxu0 0
      %529 = vmatprep.subr.bf16.mxu0 0
      %530 = vmatpush1.bf16.xpose.msra.mxu0 0
      %531 = vmatprep.subr.bf16.mxu0 0
      %532 = vmatpush1.bf16.xpose.msra.mxu0 %v515
      %533 = vmatprep.subr.bf16.mxu0 0
      %534 = vmatpush2.bf16.xpose.msra.mxu0 0
      %535 = vmatprep.subr.bf16.mxu0 0
      %536 = vmatpush2.bf16.xpose.msra.mxu0 0
      %537 = vmatprep.subr.bf16.mxu0 0
      %538 = vmatpush2.bf16.xpose.msra.mxu0 0
      %539 = vmatprep.subr.bf16.mxu0 0
      %540 = vmatpush2.bf16.xpose.msra.mxu0 0
      %541 = vmatprep.subr.bf16.mxu0 0
      %542 = vmatpush2.bf16.xpose.msra.mxu0 0
      %543 = vmatprep.subr.bf16.mxu0 0
      %544 = vmatpush2.bf16.xpose.msra.mxu0 0
      %545 = vmatprep.subr.bf16.mxu0 0
      %546 = vmatpush2.bf16.xpose.msra.mxu0 0
      %547 = vmatprep.subr.bf16.mxu0 0
      %548 = vmatpush2.bf16.xpose.msra.mxu0 0
      %549 = vmatprep.mubr.bf16.mxu0 0
      %550 = vmatmul.mubr.bf16.gmra.mxu0 %v512
      %v551 = vpop.f32.mrf.mxu0
      %v552 = vadd.f32 0.0, %v551
      %v553 = vpop.f32.mrf.mxu0
      %v554 = vpop.f32.mrf.mxu0
      %v555 = vpop.f32.mrf.mxu0
      %556 = vdwg.mxu0
      %v557 = vmul.f32 %v552, 0.25
      %v558 = vsel %vm443, %v557, -3.4028235e+38
      %v559 = vsel %vm445, %v558, -inf
      %560 = vmax.xlane.f32.xlu0 %v559
      %v561 = vpop.xlane.xlu0 %560
      %v562 = vsub.f32 %v558, %v561
      %v563 = vmul.f32 %v562, 1.442695
      %v564 = vpow.pop %v563
      %v565 = vsel %vm445, %v564, 0.0
      %566 = vadd.xlane.f32.xlu0 %v565
      %v567 = vpop.xlane.xlu0 %566
      %v568 = vrcp.pop %v567
      %v569 = vmul.f32 %v564, %v568
      %v570 = vpack.c.bf16 %v569, %v569
      %571 = vrot.lane.b32.xlu0 %v385, 48
      %v572 = vpop.permute.xlu0 %571
      %v574 = vsel %vm445, %v570, 0
      %v577 = vsel %vm463, %v572, 0
      %579 = vmatprep.subr.bf16.mxu0 0
      %580 = vmatpush1.bf16.msra.mxu0 0
      %581 = vmatprep.subr.bf16.mxu0 0
      %582 = vmatpush1.bf16.msra.mxu0 0
      %583 = vmatprep.subr.bf16.mxu0 0
      %584 = vmatpush1.bf16.msra.mxu0 0
      %585 = vmatprep.subr.bf16.mxu0 0
      %586 = vmatpush1.bf16.msra.mxu0 0
      %587 = vmatprep.subr.bf16.mxu0 0
      %588 = vmatpush1.bf16.msra.mxu0 0
      %589 = vmatprep.subr.bf16.mxu0 0
      %590 = vmatpush1.bf16.msra.mxu0 0
      %591 = vmatprep.subr.bf16.mxu0 0
      %592 = vmatpush1.bf16.msra.mxu0 0
      %593 = vmatprep.subr.bf16.mxu0 0
      %594 = vmatpush1.bf16.msra.mxu0 %v577
      %595 = vmatprep.subr.bf16.mxu0 0
      %596 = vmatpush2.bf16.msra.mxu0 0
      %597 = vmatprep.subr.bf16.mxu0 0
      %598 = vmatpush2.bf16.msra.mxu0 0
      %599 = vmatprep.subr.bf16.mxu0 0
      %600 = vmatpush2.bf16.msra.mxu0 0
      %601 = vmatprep.subr.bf16.mxu0 0
      %602 = vmatpush2.bf16.msra.mxu0 0
      %603 = vmatprep.subr.bf16.mxu0 0
      %604 = vmatpush2.bf16.msra.mxu0 0
      %605 = vmatprep.subr.bf16.mxu0 0
      %606 = vmatpush2.bf16.msra.mxu0 0
      %607 = vmatprep.subr.bf16.mxu0 0
      %608 = vmatpush2.bf16.msra.mxu0 0
      %609 = vmatprep.subr.bf16.mxu0 0
      %610 = vmatpush2.bf16.msra.mxu0 0
      %611 = vmatprep.mubr.bf16.mxu0 0
      %612 = vmatmul.mubr.bf16.gmra.mxu0 %v574
      %v613 = vpop.f32.mrf.mxu0
      %v614 = vadd.f32 0.0, %v613
      %v615 = vpop.f32.mrf.mxu0
      %v616 = vpop.f32.mrf.mxu0
      %v617 = vpop.f32.mrf.mxu0
      %618 = vdwg.mxu0
      %620 = vrot.lane.b32.xlu0 %v614, 16
      %v621 = vpop.permute.xlu0 %620
      %v623 = vsel %vm389, %v502, %v621
      %v624 = vpack.c.bf16 %v623, %v623
      %v625 = vld [vmem:[%s4] sm:$0xf]
      %v626 = vld [vmem:[%s4 + $0x4] sm:$0xf]
      %v627 = vld [vmem:[%s4 + $0x8] sm:$0xf]
      %v628 = vld [vmem:[%s4 + $0xc] sm:$0xf]
      %v629 = vld [vmem:[%s5] sm:$0x1]
      %v631 = vlaneseq
      %v632 = vshrl.u32 %v631, 7
      %v633 = vsub.s32 0, %v632
      %v634 = vrot.slane %v629, %v633
      %v640 = vunpack.c.l.b16 %v625
      %v641 = vunpack.c.l.b16 %v626
      %v642 = vunpack.c.l.b16 %v627
      %v643 = vunpack.c.l.b16 %v628
      %v644 = vpack.c.b16 %v641, %v640
      %v645 = vpack.c.b16 %v643, %v642
      %v649 = vsel %vm341, %v624, 0
      %651 = vmatprep.subr.bf16.mxu0 0
      %652 = vmatpush1.bf16.msra.mxu0 0
      %653 = vmatprep.subr.bf16.mxu0 0
      %654 = vmatpush1.bf16.msra.mxu0 0
      %655 = vmatprep.subr.bf16.mxu0 0
      %656 = vmatpush1.bf16.msra.mxu0 0
      %657 = vmatprep.subr.bf16.mxu0 0
      %658 = vmatpush1.bf16.msra.mxu0 0
      %659 = vmatprep.subr.bf16.mxu0 0
      %660 = vmatpush1.bf16.msra.mxu0 0
      %661 = vmatprep.subr.bf16.mxu0 0
      %662 = vmatpush1.bf16.msra.mxu0 0
      %663 = vmatprep.subr.bf16.mxu0 0
      %664 = vmatpush1.bf16.msra.mxu0 %v645
      %665 = vmatprep.subr.bf16.mxu0 0
      %666 = vmatpush1.bf16.msra.mxu0 %v644
      %667 = vmatprep.subr.bf16.mxu0 0
      %668 = vmatpush2.bf16.msra.mxu0 0
      %669 = vmatprep.subr.bf16.mxu0 0
      %670 = vmatpush2.bf16.msra.mxu0 0
      %671 = vmatprep.subr.bf16.mxu0 0
      %672 = vmatpush2.bf16.msra.mxu0 0
      %673 = vmatprep.subr.bf16.mxu0 0
      %674 = vmatpush2.bf16.msra.mxu0 0
      %675 = vmatprep.subr.bf16.mxu0 0
      %676 = vmatpush2.bf16.msra.mxu0 0
      %677 = vmatprep.subr.bf16.mxu0 0
      %678 = vmatpush2.bf16.msra.mxu0 0
      %679 = vmatprep.subr.bf16.mxu0 0
      %680 = vmatpush2.bf16.msra.mxu0 0
      %681 = vmatprep.subr.bf16.mxu0 0
      %682 = vmatpush2.bf16.msra.mxu0 0
      %683 = vmatprep.mubr.bf16.mxu0 0
      %684 = vmatmul.mubr.bf16.gmra.mxu0 %v649
      %v685 = vpop.f32.mrf.mxu0
      %v686 = vadd.f32 %v634, %v685
      %v687 = vpop.f32.mrf.mxu0
      %v688 = vpop.f32.mrf.mxu0
      %v689 = vpop.f32.mrf.mxu0
      %690 = vdwg.mxu0
      %v691 = vunpack.c.l.bf16 %v316
      %v692 = vadd.f32 %v686, %v691
      %v693 = vsel %vm341, %v692, 0.0
      %694 = vadd.xlane.f32.xlu0 %v693
      %v695 = vpop.xlane.xlu0 %694
      %v696 = vrcp.pop 32.0
      %v697 = vmul.f32 %v695, %v696
      %v698 = vsub.f32 %v692, %v697
      %v699 = vmul.f32 %v698, %v698
      %v700 = vsel %vm341, %v699, 0.0
      %701 = vadd.xlane.f32.xlu0 %v700
      %v702 = vpop.xlane.xlu0 %701
      %v703 = vmul.f32 %v702, %v696
      %v704 = vadd.f32 %v703, 1e-12
      %v705 = vrsqrt.pop %v704
      %v706 = vmul.f32 %v698, %v705
      %v707 = vld [vmem:[%s6] sm:$0x1]
      %v709 = vlaneseq
      %v710 = vshrl.u32 %v709, 7
      %v711 = vsub.s32 0, %v710
      %v712 = vrot.slane %v707, %v711
      %v714 = vmul.f32 %v706, %v712
      %v715 = vld [vmem:[%s7] sm:$0x1]
      %v717 = vlaneseq
      %v718 = vshrl.u32 %v717, 7
      %v719 = vsub.s32 0, %v718
      %v720 = vrot.slane %v715, %v719
      %v722 = vadd.f32 %v714, %v720
      %v723 = vpack.c.bf16 %v722, %v722
      %vm724 = vcmask 257024
      %725 = vst.msk [vmem:[%s314] sm:$0xf] %vm724, %v723
      %p726 = scmp.lt.s32.totalorder %s19, 1
      %s727 = scalar_select %p726, %s19, 1
      %s728 = smul.addr %s727, 4
      %s729 = scalar_lea.vmem %s8, %s728
      // Predicated region
      $region53: #{intent_classifier_forward.7} parent=51 // pred_check
        %p730 = pneg %p215
      $region54: #{intent_classifier_forward.7} parent=51 // pred_check_branch
        %732 = sbr.rel (%p730) target = $region56
      $region55: #{intent_classifier_forward.7} parent=51 // pred_region
        _
      $region56: #{intent_classifier_forward.7} parent=51 // pred_fallthru
        _
    $region52: #{intent_classifier_forward.7} parent=5 // pred_fallthru
      _
    %p733 = scmp.le.s32.totalorder 2, %s14
    // Predicated region
    $region57: #{intent_classifier_forward.7} parent=5 // pred_check
      %p734 = pneg %p733
    $region58: #{intent_classifier_forward.7} parent=5 // pred_check_branch
      %736 = sbr.rel (%p734) target = $region60
    $region59: #{intent_classifier_forward.7} parent=5 // pred_region
      %s737 = ssub.s32 %s14, 2
      // Predicated region
      $region61: #{intent_classifier_forward.7} parent=59 // pred_check
        %p738 = pneg %p221
      $region62: #{intent_classifier_forward.7} parent=59 // pred_check_branch
        %740 = sbr.rel (%p738) target = $region64
      $region63: #{intent_classifier_forward.7} parent=59 // pred_region
        %p741 = scmp.lt.s32.totalorder %s20, 1
        %s742 = scalar_select %p741, %s20, 1
        %s743 = smul.addr %s742, 4
        %s744 = scalar_lea.vmem %s8, %s743
      $region64: #{intent_classifier_forward.7} parent=59 // pred_fallthru
        _
    $region60: #{intent_classifier_forward.7} parent=5 // pred_fallthru
      _
  $region6: #{intent_classifier_forward.7} parent=0 // loop_footer
    %s18 = sadd.s32 1, %s14
  $region7: #{intent_classifier_forward.7} parent=0 // loop_footer_branch
    %13 = sbr.rel target = $region3
  $region8: #{intent_classifier_forward.7} parent=0 // loop_exit
    _

</llo_original>
